<compile_context>
chip_gen: v7x
topology: tpu7x:2x2x1
jax: 0.10.0
libtpu: 0.0.40
codegen_flags: <defaults>
</compile_context>

<pallas_src>
import functools

import jax
import jax.numpy as jnp
from jax.experimental import pallas as pl
from jax.experimental.pallas import tpu as pltpu

# ---------------------------------------------------------------- dimensions
INPUT_DIM = 25
WIDTH1 = 100       # f1 hidden width (== width3)
WIDTH2 = 30        # f2 hidden width
EMBED = 3          # f2 output embedding dim
WIDTH3 = 100       # f3 hidden width
ZOM_DIM = 2 * INPUT_DIM      # concat([z, omega], axis=1) feature dim = 50
ZOM_PAD = 64                 # zom padded to a sublane-tile-aligned K

LANES = 256                  # packed weight slab width (one v6e/v7x MXU pass)
F2_COL = 128                 # lane offset of the f2 block inside the 256-wide slab

# Row offsets of each layer block inside the bf16 weight slab (all multiples of 16).
R_A = 0                      # fused first layer       (64  x 256)
R_B = R_A + ZOM_PAD          # fused second layer      (256 x 256)
R_C = R_B + LANES            # f1-L3  (+ I_30 carry)   (256 x 256)
R_D = R_C + LANES            # f3-L1  (w2c folded in)  (256 x 128 used)
R_E = R_D + LANES            # f3-L2                   (128 x 128 used)
R_F = R_E + F2_COL           # f3-L3                   (128 x 128 used)
W_ROWS = R_F + F2_COL        # 1088

# Rows inside the f32 bias slab.
(ROW_A, ROW_B, ROW_C, ROW_D, ROW_E, ROW_F, ROW_W3D, ROW_B3D) = range(8)
B_ROWS = 8

MAX_TILE = 2048              # perf-review sweep target; VMEM footprint stays far below limits


# ------------------------------------------------------------------- kernel
def penn_kernel(zom_ref, w_ref, b_ref, out_ref, *, ew_bf16):
    bf16 = jnp.bfloat16
    f32 = jnp.float32

    def layer(h, r0, k, brow, n):
        """relu(h @ W[r0:r0+k, :n] + b[brow, :n]); f32 MXU accumulation, bf16 result."""
        acc = jnp.dot(h, w_ref[r0:r0 + k, 0:n], preferred_element_type=f32)
        b = b_ref[brow:brow + 1, 0:n]
        if ew_bf16:
            # v6e/v7x: native bf16 VALU -> halve VPU/vst traffic of the bias/ReLU chain.
            return jnp.maximum(acc.astype(bf16) + b.astype(bf16), 0)
        # v5e and older: keep elementwise math in f32 (no bf16 VALU path).
        return jnp.maximum(acc + b, 0.0).astype(bf16)

    h = zom_ref[...]                               # (T, 64) bf16: [z | omega | 0-pad]
    h = layer(h, R_A, ZOM_PAD, ROW_A, LANES)       # f1-L1 (+) f2-L1          -> (T, 256)
    h = layer(h, R_B, LANES,   ROW_B, LANES)       # f1-L2 (+) f2-L2          -> (T, 256)
    h = layer(h, R_C, LANES,   ROW_C, LANES)       # f1-L3 (+) identity carry -> (T, 256)
    h = layer(h, R_D, LANES,   ROW_D, F2_COL)      # f3-L1 (w2c/b2c folded)   -> (T, 128)
    h = layer(h, R_E, F2_COL,  ROW_E, F2_COL)      # f3-L2                    -> (T, 128)
    h = layer(h, R_F, F2_COL,  ROW_F, F2_COL)      # f3-L3                    -> (T, 128)

    # final 100 -> 1 Linear: VPU multiply + cross-lane reduction (no N=1 MXU pass).
    w_last = b_ref[ROW_W3D:ROW_W3D + 1, 0:F2_COL]  # (1, 128) f32, zero past col 100
    b_last = b_ref[ROW_B3D:ROW_B3D + 1, 0:1]       # (1, 1)   f32
    out_ref[...] = jnp.sum(h.astype(f32) * w_last, axis=-1, keepdims=True) + b_last


# ------------------------------------------------------------------ wrapper
def _round_up(n, m):
    return ((n + m - 1) // m) * m


def _pick_tile(batch):
    """Batch tile + grid size.

    * Large tiles amortise per-grid-step pipeline overhead.
    * >=2 grid steps when the batch is big enough, so v7x's two TensorCores
      both get work on the "parallel" axis.
    * Tile derived from cdiv(batch, n_tiles) so padded tail tiles are minimal.
    """
    n_tiles = max(1, pl.cdiv(batch, MAX_TILE))
    if n_tiles == 1 and batch >= 64:
        n_tiles = 2
    tile = _round_up(pl.cdiv(batch, n_tiles), 16)   # bf16 sublane tile = 16
    return tile, n_tiles


def _use_bf16_elementwise():
    """bf16 bias/ReLU only on chips with a native bf16 VALU (v6e / v7x)."""
    try:
        kind = jax.devices()[0].device_kind.lower()
    except Exception:
        return False
    return ("v6" in kind) or ("v7" in kind) or ("7x" in kind)


@jax.jit
def penn_forward(z, omega, w_slab, b_slab):
    batch = z.shape[0]                      # static at trace time
    tile, n_tiles = _pick_tile(batch)
    b_pad = tile * n_tiles
    ew_bf16 = _use_bf16_elementwise()

    zom = jnp.concatenate([z, omega], axis=1).astype(jnp.bfloat16)        # (B, 50)
    zom = jnp.pad(zom, ((0, b_pad - batch), (0, ZOM_PAD - ZOM_DIM)))      # (b_pad, 64)

    out = pl.pallas_call(
        functools.partial(penn_kernel, ew_bf16=ew_bf16),
        out_shape=jax.ShapeDtypeStruct((b_pad, 1), jnp.float32),
        grid_spec=pltpu.PrefetchScalarGridSpec(
            num_scalar_prefetch=0,
            grid=(n_tiles,),
            in_specs=[
                pl.BlockSpec((tile, ZOM_PAD), lambda i: (i, 0)),      # activations (pipelined)
                pl.BlockSpec((W_ROWS, LANES), lambda i: (0, 0)),      # weight slab (resident)
                pl.BlockSpec((B_ROWS, LANES), lambda i: (0, 0)),      # bias slab   (resident)
            ],
            out_specs=pl.BlockSpec((tile, 1), lambda i: (i, 0)),
        ),
        compiler_params=pltpu.CompilerParams(
            dimension_semantics=("parallel",),
        ),
    )(zom, w_slab, b_slab)
    return out[:batch]


# ------------------------------------------------------------- param helpers
def init_linear(key, fan_in, fan_out):
    """PyTorch-style nn.Linear init (uniform +/- 1/sqrt(fan_in)); weight stored (in, out)."""
    kw, kb = jax.random.split(key)
    bound = 1.0 / float(fan_in) ** 0.5
    w = jax.random.uniform(kw, (fan_in, fan_out), jnp.float32, -bound, bound)
    b = jax.random.uniform(kb, (1, fan_out), jnp.float32, -bound, bound)
    return w, b


def init_penn_params(key):
    """Raw per-layer params in (in, out) layout, mirroring the PyTorch module."""
    keys = jax.random.split(key, 10)
    w1a, b1a = init_linear(keys[0], INPUT_DIM, WIDTH1)
    w1b, b1b = init_linear(keys[1], WIDTH1, WIDTH1)
    w1c, b1c = init_linear(keys[2], WIDTH1, WIDTH1)
    w2a, b2a = init_linear(keys[3], INPUT_DIM, WIDTH2)
    w2b, b2b = init_linear(keys[4], WIDTH2, WIDTH2)
    w2c, b2c = init_linear(keys[5], WIDTH2, EMBED)
    w3a, b3a = init_linear(keys[6], WIDTH1 + EMBED, WIDTH3)
    w3b, b3b = init_linear(keys[7], WIDTH3, WIDTH3)
    w3c, b3c = init_linear(keys[8], WIDTH3, WIDTH3)
    w3d, b3d = init_linear(keys[9], WIDTH3, 1)
    return (w1a, b1a, w1b, b1b, w1c, b1c,
            w2a, b2a, w2b, b2b, w2c, b2c,
            w3a, b3a, w3b, b3b, w3c, b3c, w3d, b3d)


def pack_penn_params(raw):
    """Pack all layers into one bf16 weight slab + one f32 bias slab."""
    (w1a, b1a, w1b, b1b, w1c, b1c,
     w2a, b2a, w2b, b2b, w2c, b2c,
     w3a, b3a, w3b, b3b, w3c, b3c, w3d, b3d) = raw

    # Split f3's first-layer weight into the f1 part and the 3-wide f2 part,
    # then fold f2's last Linear (30->3, no ReLU) into it (exact algebra, f32).
    w3a_z = w3a[:WIDTH1]                    # (100, 100)
    w3a_e = w3a[WIDTH1:]                    # (3, 100)
    w_fold = w2c @ w3a_e                    # (30, 100)
    b3a_fold = b3a + b2c @ w3a_e            # (1, 100)

    w32 = jnp.zeros((W_ROWS, LANES), jnp.float32)

    def put(slab, r, c, w):
        return slab.at[r:r + w.shape[0], c:c + w.shape[1]].set(w)

    # A: fused first layer (z -> f1 block at cols 0:100, omega -> f2 block at 128:158)
    w32 = put(w32, R_A, 0, w1a)
    w32 = put(w32, R_A + INPUT_DIM, F2_COL, w2a)
    # B: block-diagonal fused second layer
    w32 = put(w32, R_B, 0, w1b)
    w32 = put(w32, R_B + F2_COL, F2_COL, w2b)
    # C: f1 third layer + identity carry of h2 (ReLU idempotent on h2 >= 0)
    w32 = put(w32, R_C, 0, w1c)
    w32 = put(w32, R_C + F2_COL, F2_COL, jnp.eye(WIDTH2, dtype=jnp.float32))
    # D: f3 first layer with folded f2 output layer
    w32 = put(w32, R_D, 0, w3a_z)
    w32 = put(w32, R_D + F2_COL, 0, w_fold)
    # E, F: f3 second / third layers
    w32 = put(w32, R_E, 0, w3b)
    w32 = put(w32, R_F, 0, w3c)

    b_slab = jnp.zeros((B_ROWS, LANES), jnp.float32)
    b_slab = b_slab.at[ROW_A, 0:WIDTH1].set(b1a[0])
    b_slab = b_slab.at[ROW_A, F2_COL:F2_COL + WIDTH2].set(b2a[0])
    b_slab = b_slab.at[ROW_B, 0:WIDTH1].set(b1b[0])
    b_slab = b_slab.at[ROW_B, F2_COL:F2_COL + WIDTH2].set(b2b[0])
    b_slab = b_slab.at[ROW_C, 0:WIDTH1].set(b1c[0])
    b_slab = b_slab.at[ROW_D, 0:WIDTH3].set(b3a_fold[0])
    b_slab = b_slab.at[ROW_E, 0:WIDTH3].set(b3b[0])
    b_slab = b_slab.at[ROW_F, 0:WIDTH3].set(b3c[0])
    b_slab = b_slab.at[ROW_W3D, 0:WIDTH3].set(w3d[:, 0])
    b_slab = b_slab.at[ROW_B3D, 0].set(b3d[0, 0])

    # Zero-padding invariant: the block-diagonal fusions / identity carry rely on
    # ReLU(0 + 0) = 0 keeping every padded lane exactly zero end-to-end.
    assert bool(jnp.all(w32[:, WIDTH1:F2_COL] == 0.0))
    assert bool(jnp.all(w32[:, F2_COL + WIDTH2:] == 0.0))
    assert bool(jnp.all(b_slab[:, WIDTH1:F2_COL] == 0.0))
    assert bool(jnp.all(b_slab[ROW_C, F2_COL:] == 0.0))
    assert bool(jnp.all(b_slab[ROW_D:, F2_COL:] == 0.0))

    return w32.astype(jnp.bfloat16), b_slab


def penn_reference(z, omega, raw):
    """Plain-JAX f32 reference mirroring the PyTorch forward (explicit concat)."""
    (w1a, b1a, w1b, b1b, w1c, b1c,
     w2a, b2a, w2b, b2b, w2c, b2c,
     w3a, b3a, w3b, b3b, w3c, b3c, w3d, b3d) = raw
    relu = lambda x: jnp.maximum(x, 0.0)
    f1 = relu(relu(relu(z @ w1a + b1a) @ w1b + b1b) @ w1c + b1c)
    f2 = relu(relu(omega @ w2a + b2a) @ w2b + b2b) @ w2c + b2c
    cat = jnp.concatenate([f1, f2], axis=1)
    h = relu(cat @ w3a + b3a)
    h = relu(h @ w3b + b3b)
    h = relu(h @ w3c + b3c)
    return h @ w3d + b3d


if __name__ == "__main__":
    key = jax.random.PRNGKey(0)
    k_params, k_z, k_om = jax.random.split(key, 3)

    batch = 200    # exercises the 2-step "parallel" grid and the padded tail rows
    z = jax.random.normal(k_z, (batch, INPUT_DIM), jnp.float32)
    omega = jax.random.normal(k_om, (batch, INPUT_DIM), jnp.float32)

    raw_params = init_penn_params(k_params)
    w_slab, b_slab = pack_penn_params(raw_params)

    out = jax.block_until_ready(penn_forward(z, omega, w_slab, b_slab))

    ref = penn_reference(z, omega, raw_params)
    assert out.shape == (batch, 1), out.shape
    # bf16 MXU operands (and bf16 elementwise on v6e/v7x) -> looser tolerance than f32.
    assert jnp.allclose(out, ref, atol=2e-2, rtol=5e-2), (
        float(jnp.max(jnp.abs(out - ref))))

    print("KERNEL_OK")
</pallas_src>

<mosaic_0001>
module attributes {stable_mosaic.version = 11 : i64} {
  func.func @penn_kernel(%arg0: i32, %arg1: memref<112x64xbf16, #tpu.memory_space<vmem>>, %arg2: memref<1088x256xbf16, #tpu.memory_space<vmem>>, %arg3: memref<8x256xf32, #tpu.memory_space<vmem>>, %arg4: memref<112x1xf32, #tpu.memory_space<vmem>>) attributes {dimension_semantics = [#tpu.dimension_semantics<parallel>], iteration_bounds = array<i64: 2>, scalar_prefetch = 0 : i64, scratch_operands = 0 : i64, tpu.core_type = #tpu.core_type<tc>, window_params = [{transform_indices = @transform_0, window_bounds = array<i64: 112, 64>}, {pipeline_mode = #tpu.pipeline_mode<synchronous>, transform_indices = @transform_1, window_bounds = array<i64: 1088, 256>}, {pipeline_mode = #tpu.pipeline_mode<synchronous>, transform_indices = @transform_2, window_bounds = array<i64: 8, 256>}, {transform_indices = @transform_3, window_bounds = array<i64: 112, 1>}]} {
    %c0 = arith.constant 0 : index
    %c0_0 = arith.constant 0 : index
    %0 = vector.load %arg1[%c0, %c0_0] : memref<112x64xbf16, #tpu.memory_space<vmem>>, vector<112x64xbf16>
    %c0_1 = arith.constant 0 : index
    %c0_2 = arith.constant 0 : index
    %1 = vector.load %arg2[%c0_1, %c0_2] : memref<1088x256xbf16, #tpu.memory_space<vmem>>, vector<64x256xbf16>
    %cst = arith.constant dense<0.000000e+00> : vector<112x256xf32>
    %2 = tpu.matmul %0, %1, %cst {dimension_numbers = #tpu.dot_dimension_numbers<[1], [0], [0], [1], [0, 0, 1, 1], [], []>} : vector<112x64xbf16>, vector<64x256xbf16>, vector<112x256xf32> -> vector<112x256xf32>
    %c0_3 = arith.constant 0 : index
    %c0_4 = arith.constant 0 : index
    %3 = vector.load %arg3[%c0_3, %c0_4] : memref<8x256xf32, #tpu.memory_space<vmem>>, vector<1x256xf32>
    %4 = vector.broadcast %3 : vector<1x256xf32> to vector<112x256xf32>
    %5 = arith.addf %2, %4 : vector<112x256xf32>
    %cst_5 = arith.constant 0.000000e+00 : f32
    %6 = vector.broadcast %cst_5 : f32 to vector<112x256xf32>
    %7 = arith.maximumf %5, %6 : vector<112x256xf32>
    %8 = arith.truncf %7 : vector<112x256xf32> to vector<112x256xbf16>
    %c64 = arith.constant 64 : index
    %c0_6 = arith.constant 0 : index
    %9 = vector.load %arg2[%c64, %c0_6] : memref<1088x256xbf16, #tpu.memory_space<vmem>>, vector<256x256xbf16>
    %cst_7 = arith.constant dense<0.000000e+00> : vector<112x256xf32>
    %10 = tpu.matmul %8, %9, %cst_7 {dimension_numbers = #tpu.dot_dimension_numbers<[1], [0], [0], [1], [0, 0, 1, 1], [], []>} : vector<112x256xbf16>, vector<256x256xbf16>, vector<112x256xf32> -> vector<112x256xf32>
    %c1 = arith.constant 1 : index
    %c0_8 = arith.constant 0 : index
    %11 = vector.load %arg3[%c1, %c0_8] : memref<8x256xf32, #tpu.memory_space<vmem>>, vector<1x256xf32>
    %12 = vector.broadcast %11 : vector<1x256xf32> to vector<112x256xf32>
    %13 = arith.addf %10, %12 : vector<112x256xf32>
    %cst_9 = arith.constant 0.000000e+00 : f32
    %14 = vector.broadcast %cst_9 : f32 to vector<112x256xf32>
    %15 = arith.maximumf %13, %14 : vector<112x256xf32>
    %16 = arith.truncf %15 : vector<112x256xf32> to vector<112x256xbf16>
    %c320 = arith.constant 320 : index
    %c0_10 = arith.constant 0 : index
    %17 = vector.load %arg2[%c320, %c0_10] : memref<1088x256xbf16, #tpu.memory_space<vmem>>, vector<256x256xbf16>
    %cst_11 = arith.constant dense<0.000000e+00> : vector<112x256xf32>
    %18 = tpu.matmul %16, %17, %cst_11 {dimension_numbers = #tpu.dot_dimension_numbers<[1], [0], [0], [1], [0, 0, 1, 1], [], []>} : vector<112x256xbf16>, vector<256x256xbf16>, vector<112x256xf32> -> vector<112x256xf32>
    %c2 = arith.constant 2 : index
    %c0_12 = arith.constant 0 : index
    %19 = vector.load %arg3[%c2, %c0_12] : memref<8x256xf32, #tpu.memory_space<vmem>>, vector<1x256xf32>
    %20 = vector.broadcast %19 : vector<1x256xf32> to vector<112x256xf32>
    %21 = arith.addf %18, %20 : vector<112x256xf32>
    %cst_13 = arith.constant 0.000000e+00 : f32
    %22 = vector.broadcast %cst_13 : f32 to vector<112x256xf32>
    %23 = arith.maximumf %21, %22 : vector<112x256xf32>
    %24 = arith.truncf %23 : vector<112x256xf32> to vector<112x256xbf16>
    %c576 = arith.constant 576 : index
    %c0_14 = arith.constant 0 : index
    %25 = vector.load %arg2[%c576, %c0_14] : memref<1088x256xbf16, #tpu.memory_space<vmem>>, vector<256x128xbf16>
    %cst_15 = arith.constant dense<0.000000e+00> : vector<112x128xf32>
    %26 = tpu.matmul %24, %25, %cst_15 {dimension_numbers = #tpu.dot_dimension_numbers<[1], [0], [0], [1], [0, 0, 1, 1], [], []>} : vector<112x256xbf16>, vector<256x128xbf16>, vector<112x128xf32> -> vector<112x128xf32>
    %c3 = arith.constant 3 : index
    %c0_16 = arith.constant 0 : index
    %27 = vector.load %arg3[%c3, %c0_16] : memref<8x256xf32, #tpu.memory_space<vmem>>, vector<1x128xf32>
    %28 = vector.broadcast %27 : vector<1x128xf32> to vector<112x128xf32>
    %29 = arith.addf %26, %28 : vector<112x128xf32>
    %cst_17 = arith.constant 0.000000e+00 : f32
    %30 = vector.broadcast %cst_17 : f32 to vector<112x128xf32>
    %31 = arith.maximumf %29, %30 : vector<112x128xf32>
    %32 = arith.truncf %31 : vector<112x128xf32> to vector<112x128xbf16>
    %c832 = arith.constant 832 : index
    %c0_18 = arith.constant 0 : index
    %33 = vector.load %arg2[%c832, %c0_18] : memref<1088x256xbf16, #tpu.memory_space<vmem>>, vector<128x128xbf16>
    %cst_19 = arith.constant dense<0.000000e+00> : vector<112x128xf32>
    %34 = tpu.matmul %32, %33, %cst_19 {dimension_numbers = #tpu.dot_dimension_numbers<[1], [0], [0], [1], [0, 0, 1, 1], [], []>} : vector<112x128xbf16>, vector<128x128xbf16>, vector<112x128xf32> -> vector<112x128xf32>
    %c4 = arith.constant 4 : index
    %c0_20 = arith.constant 0 : index
    %35 = vector.load %arg3[%c4, %c0_20] : memref<8x256xf32, #tpu.memory_space<vmem>>, vector<1x128xf32>
    %36 = vector.broadcast %35 : vector<1x128xf32> to vector<112x128xf32>
    %37 = arith.addf %34, %36 : vector<112x128xf32>
    %cst_21 = arith.constant 0.000000e+00 : f32
    %38 = vector.broadcast %cst_21 : f32 to vector<112x128xf32>
    %39 = arith.maximumf %37, %38 : vector<112x128xf32>
    %40 = arith.truncf %39 : vector<112x128xf32> to vector<112x128xbf16>
    %c960 = arith.constant 960 : index
    %c0_22 = arith.constant 0 : index
    %41 = vector.load %arg2[%c960, %c0_22] : memref<1088x256xbf16, #tpu.memory_space<vmem>>, vector<128x128xbf16>
    %cst_23 = arith.constant dense<0.000000e+00> : vector<112x128xf32>
    %42 = tpu.matmul %40, %41, %cst_23 {dimension_numbers = #tpu.dot_dimension_numbers<[1], [0], [0], [1], [0, 0, 1, 1], [], []>} : vector<112x128xbf16>, vector<128x128xbf16>, vector<112x128xf32> -> vector<112x128xf32>
    %c5 = arith.constant 5 : index
    %c0_24 = arith.constant 0 : index
    %43 = vector.load %arg3[%c5, %c0_24] : memref<8x256xf32, #tpu.memory_space<vmem>>, vector<1x128xf32>
    %44 = vector.broadcast %43 : vector<1x128xf32> to vector<112x128xf32>
    %45 = arith.addf %42, %44 : vector<112x128xf32>
    %cst_25 = arith.constant 0.000000e+00 : f32
    %46 = vector.broadcast %cst_25 : f32 to vector<112x128xf32>
    %47 = arith.maximumf %45, %46 : vector<112x128xf32>
    %48 = arith.truncf %47 : vector<112x128xf32> to vector<112x128xbf16>
    %c6 = arith.constant 6 : index
    %c0_26 = arith.constant 0 : index
    %49 = vector.load %arg3[%c6, %c0_26] : memref<8x256xf32, #tpu.memory_space<vmem>>, vector<1x128xf32>
    %c7 = arith.constant 7 : index
    %c0_27 = arith.constant 0 : index
    %50 = vector.load %arg3[%c7, %c0_27] : memref<8x256xf32, #tpu.memory_space<vmem>>, vector<1x1xf32>
    %51 = arith.extf %48 : vector<112x128xbf16> to vector<112x128xf32>
    %52 = vector.broadcast %49 : vector<1x128xf32> to vector<112x128xf32>
    %53 = arith.mulf %51, %52 : vector<112x128xf32>
    %cst_28 = arith.constant dense<0.000000e+00> : vector<112xf32>
    %54 = vector.multi_reduction <add>, %53, %cst_28 [1] : vector<112x128xf32> to vector<112xf32>
    %55 = vector.shape_cast %54 : vector<112xf32> to vector<112x1xf32>
    %56 = vector.broadcast %50 : vector<1x1xf32> to vector<112x1xf32>
    %57 = arith.addf %55, %56 : vector<112x1xf32>
    %c0_29 = arith.constant 0 : index
    %c0_30 = arith.constant 0 : index
    %58 = vector.load %arg4[%c0_29, %c0_30] : memref<112x1xf32, #tpu.memory_space<vmem>>, vector<112x1xf32>
    tpu.vector_store %arg4[%c0_29, %c0_30], %57 {strides = array<i32>} : memref<112x1xf32, #tpu.memory_space<vmem>>, vector<112x1xf32>,
    return
  }
  func.func @transform_0(%arg0: i32) -> (i32, i32) {
    %c0_i32 = arith.constant 0 : i32
    %c0_i32_0 = arith.constant 0 : i32
    return %arg0, %c0_i32 : i32, i32
  }
  func.func @transform_1(%arg0: i32) -> (i32, i32) {
    %c0_i32 = arith.constant 0 : i32
    %c0_i32_0 = arith.constant 0 : i32
    %c0_i32_1 = arith.constant 0 : i32
    return %c0_i32, %c0_i32_0 : i32, i32
  }
  func.func @transform_2(%arg0: i32) -> (i32, i32) {
    %c0_i32 = arith.constant 0 : i32
    %c0_i32_0 = arith.constant 0 : i32
    %c0_i32_1 = arith.constant 0 : i32
    return %c0_i32, %c0_i32_0 : i32, i32
  }
  func.func @transform_3(%arg0: i32) -> (i32, i32) {
    %c0_i32 = arith.constant 0 : i32
    %c0_i32_0 = arith.constant 0 : i32
    return %arg0, %c0_i32 : i32, i32
  }
}

</mosaic_0001>

<llo_original>
// kernel: penn_forward.1
$region0: #{penn_forward.1}
  #allocation0 [shape = 'u32[]', space=smem, size = 0x4, offset = 0x4, fixed_abs, tag = 'smem constant byte address 0x4 - core index']
  #allocation1 [shape = 'u32[144,128]{1,0:T(1,128)}', space=vmem, size = 0x12000, scoped, tag = 'internal scratch']
  %s0 = inlined_call_operand.vmem [shape: bf16[224,64], index: 0, kind: input, shape index: {}]
  %s1 = inlined_call_operand.hbm [shape: bf16[1088,256], index: 1, kind: input, shape index: {}]
  %s2 = inlined_call_operand.vmem [shape: f32[8,256], index: 2, kind: input, shape index: {}]
  %s3 = inlined_call_operand.vmem [shape: f32[224,1], index: 3, kind: output, shape index: {}]
  %s4 = sld [smem:[#allocation0]]
  $region49: #{penn_forward.1} parent=0
    _
  %s6 = ssub.s32 1, %s4
  %s7 = scalar_select 0, %s6, %s4
  $region1: #{penn_forward.1} parent=0
    #allocation2 [shape = 'u8[557056]{0}', space=vmem, size = 0x88000, scoped, tag = 'input window, operand 1, single buffered']
    #allocation3 [shape = 's32[2]{0}', space=sflag, size = 0x8, scoped, tag = 'scoped memory for penn_forward.1']
    %8 = vsyncpa [#allocation3], 0
    loop: start=0, step=1, limit=4
    $region2: #{penn_forward.1} parent=1 // loop_pre_header
      _
    $region3: #{penn_forward.1} parent=1 // loop_header
      %s10 = sphi 0, %s14
      %p11 = scmp.ge.s32.totalorder %s10, 4
      %s20 = sphi 0, %s22
      %s23 = sphi 0, %s20
      %s24 = sphi 0, %s23
      %s40 = sphi 0, %s24
      %s44 = sphi 0, %s44
      %s46 = sphi 0, %s44
      %s47 = sphi 0, %s46
      %s61 = sphi 0, %s47
      %s65 = sphi 0, %s65
      %s67 = sphi 0, %s65
      %s68 = sphi 0, %s67
      %s82 = sphi 0, %s68
      %s88 = sphi 0, %s90
      %s91 = sphi 0, %s88
      %s92 = sphi 0, %s91
      %s108 = sphi 0, %s92
    $region4: #{penn_forward.1} parent=1 // loop_header_branch
      %13 = sbr.rel (%p11) target = $region8
    $region5: #{penn_forward.1} parent=1 // loop_body
      %s15 = ssub.s32 %s10, 1
      %s16 = ssub.s32 %s10, 2
      %s17 = sadd.s32 %s10, 1
      %s18 = ssub.s32 %s10, %s17
      %p19 = scmp.eq.s32.totalorder %s18, 0
      %s21 = sadd.s32 %s20, 1
      %s22 = scalar_select %p19, %s20, %s21
      %p25 = pneg %p19
      %p26 = scmp.eq.s32.totalorder %s10, 1
      %p27 = por %p25, %p26
      %p28 = scmp.ne.s32.totalorder %s20, %s23
      %p29 = scmp.eq.s32.totalorder %s10, 0
      %p30 = por %p28, %p29
      %p31 = scmp.ne.s32.totalorder %s20, %s23
      %p32 = scmp.eq.s32.totalorder %s15, 1
      %p33 = por %p31, %p32
      %p34 = scmp.ne.s32.totalorder %s23, %s24
      %p35 = scmp.eq.s32.totalorder %s15, 0
      %p36 = por %p34, %p35
      %p37 = scmp.ne.s32.totalorder %s23, %s24
      %p38 = scmp.eq.s32.totalorder %s16, 1
      %p39 = por %p37, %p38
      %p41 = scmp.ne.s32.totalorder %s24, %s40
      %p42 = scmp.eq.s32.totalorder %s16, 0
      %p43 = por %p41, %p42
      %s45 = sadd.s32 %s44, 1
      %p48 = scmp.eq.s32.totalorder %s10, 1
      %p49 = scmp.ne.s32.totalorder %s44, %s46
      %p50 = scmp.eq.s32.totalorder %s10, 0
      %p51 = por %p49, %p50
      %p52 = scmp.ne.s32.totalorder %s44, %s46
      %p53 = scmp.eq.s32.totalorder %s15, 1
      %p54 = por %p52, %p53
      %p55 = scmp.ne.s32.totalorder %s46, %s47
      %p56 = scmp.eq.s32.totalorder %s15, 0
      %p57 = por %p55, %p56
      %p58 = scmp.ne.s32.totalorder %s46, %s47
      %p59 = scmp.eq.s32.totalorder %s16, 1
      %p60 = por %p58, %p59
      %p62 = scmp.ne.s32.totalorder %s47, %s61
      %p63 = scmp.eq.s32.totalorder %s16, 0
      %p64 = por %p62, %p63
      %s66 = sadd.s32 %s65, 1
      %p69 = scmp.eq.s32.totalorder %s10, 1
      %p70 = scmp.ne.s32.totalorder %s65, %s67
      %p71 = scmp.eq.s32.totalorder %s10, 0
      %p72 = por %p70, %p71
      %p73 = scmp.ne.s32.totalorder %s65, %s67
      %p74 = scmp.eq.s32.totalorder %s15, 1
      %p75 = por %p73, %p74
      %p76 = scmp.ne.s32.totalorder %s67, %s68
      %p77 = scmp.eq.s32.totalorder %s15, 0
      %p78 = por %p76, %p77
      %p79 = scmp.ne.s32.totalorder %s67, %s68
      %p80 = scmp.eq.s32.totalorder %s16, 1
      %p81 = por %p79, %p80
      %p83 = scmp.ne.s32.totalorder %s68, %s82
      %p84 = scmp.eq.s32.totalorder %s16, 0
      %p85 = por %p83, %p84
      %s86 = ssub.s32 %s10, %s17
      %p87 = scmp.eq.s32.totalorder %s86, 0
      %s89 = sadd.s32 %s88, 1
      %s90 = scalar_select %p87, %s88, %s89
      %p93 = pneg %p87
      %p94 = scmp.eq.s32.totalorder %s10, 1
      %p95 = por %p93, %p94
      %p96 = scmp.ne.s32.totalorder %s88, %s91
      %p97 = scmp.eq.s32.totalorder %s10, 0
      %p98 = por %p96, %p97
      %p99 = scmp.ne.s32.totalorder %s88, %s91
      %p100 = scmp.eq.s32.totalorder %s15, 1
      %p101 = por %p99, %p100
      %p102 = scmp.ne.s32.totalorder %s91, %s92
      %p103 = scmp.eq.s32.totalorder %s15, 0
      %p104 = por %p102, %p103
      %p105 = scmp.ne.s32.totalorder %s91, %s92
      %p106 = scmp.eq.s32.totalorder %s16, 1
      %p107 = por %p105, %p106
      %p109 = scmp.ne.s32.totalorder %s92, %s108
      %p110 = scmp.eq.s32.totalorder %s16, 0
      %p111 = por %p109, %p110
      %p112 = scmp.le.s32.totalorder 1, %s10
      %p113 = scmp.lt.s32.totalorder %s10, 3
      %p114 = pnand %p112, %p113
      %p115 = pneg %p114
      // Predicated region
      $region9: #{penn_forward.1} parent=5 // pred_check
        _
      $region10: #{penn_forward.1} parent=5 // pred_check_branch
        %117 = sbr.rel (%p114) target = $region12
      $region11: #{penn_forward.1} parent=5 // pred_region
        %s118 = ssub.s32 %s10, 1
        // Predicated region
        $region13: #{penn_forward.1} parent=11 // pred_check
          %p119 = pneg %p57
        $region14: #{penn_forward.1} parent=11 // pred_check_branch
          %121 = sbr.rel (%p119) target = $region16
        $region15: #{penn_forward.1} parent=11 // pred_region
          %s123 = ssub.s32 17408, 17408
          %124 = vsyncadd [#allocation3], %s123
          %s125 = sshll.u32 [#allocation2], 4
          %s126 = int_to_ptr.vmem [resolvable:$true] %s125
          %131 = dma.hbm_to_vmem [thread:$0]  %s1, 17408, %s126, [#allocation3], 128, 128, 8
        $region16: #{penn_forward.1} parent=11 // pred_fallthru
          _
        // Predicated region
        $region17: #{penn_forward.1} parent=11 // pred_check
          %p132 = pneg %p78
        $region18: #{penn_forward.1} parent=11 // pred_check_branch
          %134 = sbr.rel (%p132) target = $region20
        $region19: #{penn_forward.1} parent=11 // pred_region
          _
        $region20: #{penn_forward.1} parent=11 // pred_fallthru
          _
      $region12: #{penn_forward.1} parent=5 // pred_fallthru
        _
      %p135 = scmp.lt.s32.totalorder %s10, 2
      // Predicated region
      $region21: #{penn_forward.1} parent=5 // pred_check
        %p136 = pneg %p135
      $region22: #{penn_forward.1} parent=5 // pred_check_branch
        %138 = sbr.rel (%p136) target = $region24
      $region23: #{penn_forward.1} parent=5 // pred_region
        // Predicated region
        $region25: #{penn_forward.1} parent=23 // pred_check
          %p139 = pneg %p30
        $region26: #{penn_forward.1} parent=23 // pred_check_branch
          %141 = sbr.rel (%p139) target = $region28
        $region27: #{penn_forward.1} parent=23 // pred_region
          %s142 = smul.u32 14, %s10
          %p143 = scmp.lt.s32.totalorder %s142, 27
          %s144 = scalar_select %p143, %s142, 27
          %s145 = smul.addr %s144, 4
          %s146 = scalar_lea.vmem %s0, %s145
          %s147 = smul.u32 14, %s10
        $region28: #{penn_forward.1} parent=23 // pred_fallthru
          _
      $region24: #{penn_forward.1} parent=5 // pred_fallthru
        _
      %p148 = scmp.le.s32.totalorder 1, %s10
      %p149 = scmp.lt.s32.totalorder %s10, 3
      %p150 = pnand %p148, %p149
      %p151 = pneg %p150
      // Predicated region
      $region29: #{penn_forward.1} parent=5 // pred_check
        _
      $region30: #{penn_forward.1} parent=5 // pred_check_branch
        %153 = sbr.rel (%p150) target = $region32
      $region31: #{penn_forward.1} parent=5 // pred_region
        %s154 = ssub.s32 %s10, 1
        // Predicated region
        $region33: #{penn_forward.1} parent=31 // pred_check
          %p155 = pneg %p57
        $region34: #{penn_forward.1} parent=31 // pred_check_branch
          %157 = sbr.rel (%p155) target = $region36
        $region35: #{penn_forward.1} parent=31 // pred_region
          %158 = dma.done [#allocation3], 17408
        $region36: #{penn_forward.1} parent=31 // pred_fallthru
          _
        %s159 = smul.u32 14, %s15
        %p160 = scmp.lt.s32.totalorder %s159, 27
        %s161 = scalar_select %p160, %s159, 27
        %s162 = smul.addr %s161, 4
        %s163 = scalar_lea.vmem %s0, %s162
        %p164 = pneg %p36
        %p165 = pneg %p33
        %p166 = pneg %p57
        %p167 = pneg %p54
        %p168 = pneg %p78
        %p169 = pneg %p75
        %p170 = pneg %p104
        %p171 = pneg %p101
        %s172 = smul.u32 14, %s15
        %p173 = scmp.lt.s32.totalorder %s172, 27
        %s174 = scalar_select %p173, %s172, 27
        %s175 = smul.addr %s174, 8
        %s176 = scalar_lea.vmem %s3, %s175
        %s177 = smul.u32 14, %s15
        %p178 = scmp.lt.s32.totalorder %s177, 27
        %s179 = scalar_select %p178, %s177, 27
        %s180 = smul.addr %s179, 4
        %s181 = scalar_lea.vmem %s0, %s180
        %s182 = smul.u32 14, %s15
        %s183 = smul.u32 14, %s15
        %p184 = scmp.lt.s32.totalorder %s183, 27
        %s185 = scalar_select %p184, %s183, 27
        %s186 = smul.addr %s185, 8
        %s187 = scalar_lea.vmem %s3, %s186
        %s188 = smul.u32 14, %s15
        %v190 = vld [vmem:[%s181] sm:$0xf]
        %v191 = vld [vmem:[%s181 + $0x4] sm:$0xf]
        %v192 = vld [vmem:[%s181 + $0x8] sm:$0xf]
        %v193 = vld [vmem:[%s181 + $0xc] sm:$0xf]
        %v194 = vld [vmem:[%s181 + $0x10] sm:$0xf]
        %v195 = vld [vmem:[%s181 + $0x14] sm:$0xf]
        %v196 = vld [vmem:[%s181 + $0x18] sm:$0xf]
        %v197 = vld [vmem:[%s181 + $0x1c] sm:$0xf]
        %v198 = vld [vmem:[%s181 + $0x20] sm:$0xf]
        %v199 = vld [vmem:[%s181 + $0x24] sm:$0xf]
        %v200 = vld [vmem:[%s181 + $0x28] sm:$0xf]
        %v201 = vld [vmem:[%s181 + $0x2c] sm:$0xf]
        %v202 = vld [vmem:[%s181 + $0x30] sm:$0xf]
        %v203 = vld [vmem:[%s181 + $0x34] sm:$0xf]
        %v204 = vld [vmem:[#allocation2] sm:$0xff]
        %v205 = vld [vmem:[#allocation2 + $0x8] sm:$0xff]
        %v206 = vld [vmem:[#allocation2 + $0x10] sm:$0xff]
        %v207 = vld [vmem:[#allocation2 + $0x18] sm:$0xff]
        %v208 = vld [vmem:[#allocation2 + $0x20] sm:$0xff]
        %v209 = vld [vmem:[#allocation2 + $0x28] sm:$0xff]
        %v210 = vld [vmem:[#allocation2 + $0x30] sm:$0xff]
        %v211 = vld [vmem:[#allocation2 + $0x38] sm:$0xff]
        %v212 = vld [vmem:[%s2] ss:$8 sm:$0x3]
        %v214 = vlaneseq
        %v215 = vshrl.u32 %v214, 7
        %v216 = vsub.s32 0, %v215
        %v217 = vrot.slane %v212, %v216
        %v218 = vlaneseq
        %v219 = vshrl.u32 %v218, 7
        %v220 = vsub.s32 1, %v219
        %v221 = vrot.slane %v212, %v220
        %v238 = vunpack.c.l.b16 %v190
        %v239 = vunpack.c.l.b16 %v191
        %v240 = vunpack.c.l.b16 %v192
        %v241 = vunpack.c.l.b16 %v193
        %v242 = vunpack.c.l.b16 %v194
        %v243 = vunpack.c.l.b16 %v195
        %v244 = vunpack.c.l.b16 %v196
        %v245 = vunpack.c.l.b16 %v197
        %v246 = vunpack.c.l.b16 %v198
        %v247 = vunpack.c.l.b16 %v199
        %v248 = vunpack.c.l.b16 %v200
        %v249 = vunpack.c.l.b16 %v201
        %v250 = vunpack.c.l.b16 %v202
        %v251 = vunpack.c.l.b16 %v203
        %v252 = vpack.c.b16 %v239, %v238
        %v253 = vpack.c.b16 %v241, %v240
        %v254 = vpack.c.b16 %v243, %v242
        %v255 = vpack.c.b16 %v245, %v244
        %v256 = vpack.c.b16 %v247, %v246
        %v257 = vpack.c.b16 %v249, %v248
        %v258 = vpack.c.b16 %v251, %v250
        %v267 = vunpack.c.l.b16 %v204
        %v268 = vunpack.c.h.b16 %v204
        %v269 = vunpack.c.l.b16 %v205
        %v270 = vunpack.c.h.b16 %v205
        %v271 = vunpack.c.l.b16 %v206
        %v272 = vunpack.c.h.b16 %v206
        %v273 = vunpack.c.l.b16 %v207
        %v274 = vunpack.c.h.b16 %v207
        %v275 = vunpack.c.l.b16 %v208
        %v276 = vunpack.c.h.b16 %v208
        %v277 = vunpack.c.l.b16 %v209
        %v278 = vunpack.c.h.b16 %v209
        %v279 = vunpack.c.l.b16 %v210
        %v280 = vunpack.c.h.b16 %v210
        %v281 = vunpack.c.l.b16 %v211
        %v282 = vunpack.c.h.b16 %v211
        %v283 = vpack.c.b16 %v269, %v267
        %v284 = vpack.c.b16 %v270, %v268
        %v285 = vpack.c.b16 %v273, %v271
        %v286 = vpack.c.b16 %v274, %v272
        %v287 = vpack.c.b16 %v277, %v275
        %v288 = vpack.c.b16 %v278, %v276
        %v289 = vpack.c.b16 %v281, %v279
        %v290 = vpack.c.b16 %v282, %v280
        %vm299 = vcmask 523264
        %v301 = vsel %vm299, %v252, 0
        %v304 = vsel %vm299, %v253, 0
        %v307 = vsel %vm299, %v254, 0
        %v310 = vsel %vm299, %v255, 0
        %v313 = vsel %vm299, %v256, 0
        %v316 = vsel %vm299, %v257, 0
        %v319 = vsel %vm299, %v258, 0
        %321 = vmatprep.subr.bf16.mxu0 %v284
        %322 = vmatpush1.bf16.msra.mxu0 %v283
        %323 = vmatprep.subr.bf16.mxu0 %v286
        %324 = vmatpush1.bf16.msra.mxu0 %v285
        %325 = vmatprep.subr.bf16.mxu0 %v288
        %326 = vmatpush1.bf16.msra.mxu0 %v287
        %327 = vmatprep.subr.bf16.mxu0 %v290
        %328 = vmatpush1.bf16.msra.mxu0 %v289
        %329 = vmatprep.subr.bf16.mxu0 0
        %330 = vmatpush1.bf16.msra.mxu0 0
        %331 = vmatprep.subr.bf16.mxu0 0
        %332 = vmatpush1.bf16.msra.mxu0 0
        %333 = vmatprep.subr.bf16.mxu0 0
        %334 = vmatpush1.bf16.msra.mxu0 0
        %335 = vmatprep.subr.bf16.mxu0 0
        %336 = vmatpush1.bf16.msra.mxu0 0
        %337 = vmatprep.subr.bf16.mxu0 0
        %338 = vmatpush1.bf16.msra.mxu0 0
        %339 = vmatprep.subr.bf16.mxu0 0
        %340 = vmatpush1.bf16.msra.mxu0 0
        %341 = vmatprep.subr.bf16.mxu0 0
        %342 = vmatpush1.bf16.msra.mxu0 0
        %343 = vmatprep.subr.bf16.mxu0 0
        %344 = vmatpush1.bf16.msra.mxu0 0
        %345 = vmatprep.subr.bf16.mxu0 0
        %346 = vmatpush1.bf16.msra.mxu0 0
        %347 = vmatprep.subr.bf16.mxu0 0
        %348 = vmatpush1.bf16.msra.mxu0 0
        %349 = vmatprep.subr.bf16.mxu0 0
        %350 = vmatpush1.bf16.msra.mxu0 0
        %351 = vmatprep.subr.bf16.mxu0 0
        %352 = vmatpush1.bf16.msra.mxu0 0
        %353 = vmatprep.mubr.bf16.mxu0 0
        %354 = vmatmul.mubr.bf16.gmra.mrb[0].mxu0 %v301
        %v355 = vpop.f32.mrb[0].mxu0
        %v356 = vadd.f32 %v217, %v355
        %v357 = vpop.f32.mrb[0].mxu0
        %v358 = vadd.f32 %v221, %v357
        %v359 = vpop.f32.mrb[0].mxu0
        %v360 = vadd.f32 %v217, %v359
        %v361 = vpop.f32.mrb[0].mxu0
        %v362 = vadd.f32 %v221, %v361
        %363 = vmatprep.mubr.bf16.mxu0 0
        %364 = vmatmul.mubr.bf16.gmra.mrb[0].mxu0 %v304
        %v365 = vpop.f32.mrb[0].mxu0
        %v366 = vadd.f32 %v217, %v365
        %v367 = vpop.f32.mrb[0].mxu0
        %v368 = vadd.f32 %v221, %v367
        %v369 = vpop.f32.mrb[0].mxu0
        %v370 = vadd.f32 %v217, %v369
        %v371 = vpop.f32.mrb[0].mxu0
        %v372 = vadd.f32 %v221, %v371
        %373 = vmatprep.mubr.bf16.mxu0 0
        %374 = vmatmul.mubr.bf16.gmra.mrb[0].mxu0 %v307
        %v375 = vpop.f32.mrb[0].mxu0
        %v376 = vadd.f32 %v217, %v375
        %v377 = vpop.f32.mrb[0].mxu0
        %v378 = vadd.f32 %v221, %v377
        %v379 = vpop.f32.mrb[0].mxu0
        %v380 = vadd.f32 %v217, %v379
        %v381 = vpop.f32.mrb[0].mxu0
        %v382 = vadd.f32 %v221, %v381
        %383 = vmatprep.mubr.bf16.mxu0 0
        %384 = vmatmul.mubr.bf16.gmra.mrb[0].mxu0 %v310
        %v385 = vpop.f32.mrb[0].mxu0
        %v386 = vadd.f32 %v217, %v385
        %v387 = vpop.f32.mrb[0].mxu0
        %v388 = vadd.f32 %v221, %v387
        %v389 = vpop.f32.mrb[0].mxu0
        %v390 = vadd.f32 %v217, %v389
        %v391 = vpop.f32.mrb[0].mxu0
        %v392 = vadd.f32 %v221, %v391
        %393 = vmatprep.mubr.bf16.mxu0 0
        %394 = vmatmul.mubr.bf16.gmra.mrb[0].mxu0 %v313
        %v395 = vpop.f32.mrb[0].mxu0
        %v396 = vadd.f32 %v217, %v395
        %v397 = vpop.f32.mrb[0].mxu0
        %v398 = vadd.f32 %v221, %v397
        %v399 = vpop.f32.mrb[0].mxu0
        %v400 = vadd.f32 %v217, %v399
        %v401 = vpop.f32.mrb[0].mxu0
        %v402 = vadd.f32 %v221, %v401
        %403 = vmatprep.mubr.bf16.mxu0 0
        %404 = vmatmul.mubr.bf16.gmra.mrb[0].mxu0 %v316
        %v405 = vpop.f32.mrb[0].mxu0
        %v406 = vadd.f32 %v217, %v405
        %v407 = vpop.f32.mrb[0].mxu0
        %v408 = vadd.f32 %v221, %v407
        %v409 = vpop.f32.mrb[0].mxu0
        %v410 = vadd.f32 %v217, %v409
        %v411 = vpop.f32.mrb[0].mxu0
        %v412 = vadd.f32 %v221, %v411
        %413 = vmatprep.mubr.bf16.mxu0 0
        %414 = vmatmul.mubr.bf16.gmra.mrb[0].mxu0 %v319
        %v415 = vpop.f32.mrb[0].mxu0
        %v416 = vadd.f32 %v217, %v415
        %v417 = vpop.f32.mrb[0].mxu0
        %v418 = vadd.f32 %v221, %v417
        %v419 = vpop.f32.mrb[0].mxu0
        %v420 = vadd.f32 %v217, %v419
        %v421 = vpop.f32.mrb[0].mxu0
        %v422 = vadd.f32 %v221, %v421
        %423 = vdwg.mxu0
        %v424 = vmax.f32 %v356, 0.0
        %v425 = vmax.f32 %v358, 0.0
        %v426 = vmax.f32 %v360, 0.0
        %v427 = vmax.f32 %v362, 0.0
        %v428 = vmax.f32 %v366, 0.0
        %v429 = vmax.f32 %v368, 0.0
        %v430 = vmax.f32 %v370, 0.0
        %v431 = vmax.f32 %v372, 0.0
        %v432 = vmax.f32 %v376, 0.0
        %v433 = vmax.f32 %v378, 0.0
        %v434 = vmax.f32 %v380, 0.0
        %v435 = vmax.f32 %v382, 0.0
        %v436 = vmax.f32 %v386, 0.0
        %v437 = vmax.f32 %v388, 0.0
        %v438 = vmax.f32 %v390, 0.0
        %v439 = vmax.f32 %v392, 0.0
        %v440 = vmax.f32 %v396, 0.0
        %v441 = vmax.f32 %v398, 0.0
        %v442 = vmax.f32 %v400, 0.0
        %v443 = vmax.f32 %v402, 0.0
        %v444 = vmax.f32 %v406, 0.0
        %v445 = vmax.f32 %v408, 0.0
        %v446 = vmax.f32 %v410, 0.0
        %v447 = vmax.f32 %v412, 0.0
        %v448 = vmax.f32 %v416, 0.0
        %v449 = vmax.f32 %v418, 0.0
        %v450 = vmax.f32 %v420, 0.0
        %v451 = vmax.f32 %v422, 0.0
        %v452 = vpack.c.bf16 %v426, %v424
        %v453 = vpack.c.bf16 %v427, %v425
        %v454 = vpack.c.bf16 %v430, %v428
        %v455 = vpack.c.bf16 %v431, %v429
        %v456 = vpack.c.bf16 %v434, %v432
        %v457 = vpack.c.bf16 %v435, %v433
        %v458 = vpack.c.bf16 %v438, %v436
        %v459 = vpack.c.bf16 %v439, %v437
        %v460 = vpack.c.bf16 %v442, %v440
        %v461 = vpack.c.bf16 %v443, %v441
        %v462 = vpack.c.bf16 %v446, %v444
        %v463 = vpack.c.bf16 %v447, %v445
        %v464 = vpack.c.bf16 %v450, %v448
        %v465 = vpack.c.bf16 %v451, %v449
        %v466 = vld [vmem:[#allocation2 + $0x40] sm:$0xff]
        %v467 = vld [vmem:[#allocation2 + $0x48] sm:$0xff]
        %v468 = vld [vmem:[#allocation2 + $0x50] sm:$0xff]
        %v469 = vld [vmem:[#allocation2 + $0x58] sm:$0xff]
        %v470 = vld [vmem:[#allocation2 + $0x60] sm:$0xff]
        %v471 = vld [vmem:[#allocation2 + $0x68] sm:$0xff]
        %v472 = vld [vmem:[#allocation2 + $0x70] sm:$0xff]
        %v473 = vld [vmem:[#allocation2 + $0x78] sm:$0xff]
        %v474 = vld [vmem:[#allocation2 + $0x80] sm:$0xff]
        %v475 = vld [vmem:[#allocation2 + $0x88] sm:$0xff]
        %v476 = vld [vmem:[#allocation2 + $0x90] sm:$0xff]
        %v477 = vld [vmem:[#allocation2 + $0x98] sm:$0xff]
        %v478 = vld [vmem:[#allocation2 + $0xa0] sm:$0xff]
        %v479 = vld [vmem:[#allocation2 + $0xa8] sm:$0xff]
        %v480 = vld [vmem:[#allocation2 + $0xb0] sm:$0xff]
        %v481 = vld [vmem:[#allocation2 + $0xb8] sm:$0xff]
        %v482 = vld [vmem:[#allocation2 + $0xc0] sm:$0xff]
        %v483 = vld [vmem:[#allocation2 + $0xc8] sm:$0xff]
        %v484 = vld [vmem:[#allocation2 + $0xd0] sm:$0xff]
        %v485 = vld [vmem:[#allocation2 + $0xd8] sm:$0xff]
        %v486 = vld [vmem:[#allocation2 + $0xe0] sm:$0xff]
        %v487 = vld [vmem:[#allocation2 + $0xe8] sm:$0xff]
        %v488 = vld [vmem:[#allocation2 + $0xf0] sm:$0xff]
        %v489 = vld [vmem:[#allocation2 + $0xf8] sm:$0xff]
        %v490 = vld [vmem:[#allocation2 + $0x100] sm:$0xff]
        %v491 = vld [vmem:[#allocation2 + $0x108] sm:$0xff]
        %v492 = vld [vmem:[#allocation2 + $0x110] sm:$0xff]
        %v493 = vld [vmem:[#allocation2 + $0x118] sm:$0xff]
        %v494 = vld [vmem:[#allocation2 + $0x120] sm:$0xff]
        %v495 = vld [vmem:[#allocation2 + $0x128] sm:$0xff]
        %v496 = vld [vmem:[#allocation2 + $0x130] sm:$0xff]
        %v497 = vld [vmem:[#allocation2 + $0x138] sm:$0xff]
        %s498 = scalar_lea.vmem %s2, 1
        %v499 = vld [vmem:[%s498] ss:$8 sm:$0x3]
        %v501 = vlaneseq
        %v502 = vshrl.u32 %v501, 7
        %v503 = vsub.s32 0, %v502
        %v504 = vrot.slane %v499, %v503
        %v505 = vlaneseq
        %v506 = vshrl.u32 %v505, 7
        %v507 = vsub.s32 1, %v506
        %v508 = vrot.slane %v499, %v507
        %v543 = vunpack.c.l.b16 %v466
        %v544 = vunpack.c.h.b16 %v466
        %v545 = vunpack.c.l.b16 %v467
        %v546 = vunpack.c.h.b16 %v467
        %v547 = vunpack.c.l.b16 %v468
        %v548 = vunpack.c.h.b16 %v468
        %v549 = vunpack.c.l.b16 %v469
        %v550 = vunpack.c.h.b16 %v469
        %v551 = vunpack.c.l.b16 %v470
        %v552 = vunpack.c.h.b16 %v470
        %v553 = vunpack.c.l.b16 %v471
        %v554 = vunpack.c.h.b16 %v471
        %v555 = vunpack.c.l.b16 %v472
        %v556 = vunpack.c.h.b16 %v472
        %v557 = vunpack.c.l.b16 %v473
        %v558 = vunpack.c.h.b16 %v473
        %v559 = vunpack.c.l.b16 %v474
        %v560 = vunpack.c.h.b16 %v474
        %v561 = vunpack.c.l.b16 %v475
        %v562 = vunpack.c.h.b16 %v475
        %v563 = vunpack.c.l.b16 %v476
        %v564 = vunpack.c.h.b16 %v476
        %v565 = vunpack.c.l.b16 %v477
        %v566 = vunpack.c.h.b16 %v477
        %v567 = vunpack.c.l.b16 %v478
        %v568 = vunpack.c.h.b16 %v478
        %v569 = vunpack.c.l.b16 %v479
        %v570 = vunpack.c.h.b16 %v479
        %v571 = vunpack.c.l.b16 %v480
        %v572 = vunpack.c.h.b16 %v480
        %v573 = vunpack.c.l.b16 %v481
        %v574 = vunpack.c.h.b16 %v481
        %v575 = vunpack.c.l.b16 %v482
        %v576 = vunpack.c.h.b16 %v482
        %v577 = vunpack.c.l.b16 %v483
        %v578 = vunpack.c.h.b16 %v483
        %v579 = vunpack.c.l.b16 %v484
        %v580 = vunpack.c.h.b16 %v484
        %v581 = vunpack.c.l.b16 %v485
        %v582 = vunpack.c.h.b16 %v485
        %v583 = vunpack.c.l.b16 %v486
        %v584 = vunpack.c.h.b16 %v486
        %v585 = vunpack.c.l.b16 %v487
        %v586 = vunpack.c.h.b16 %v487
        %v587 = vunpack.c.l.b16 %v488
        %v588 = vunpack.c.h.b16 %v488
        %v589 = vunpack.c.l.b16 %v489
        %v590 = vunpack.c.h.b16 %v489
        %v591 = vunpack.c.l.b16 %v490
        %v592 = vunpack.c.h.b16 %v490
        %v593 = vunpack.c.l.b16 %v491
        %v594 = vunpack.c.h.b16 %v491
        %v595 = vunpack.c.l.b16 %v492
        %v596 = vunpack.c.h.b16 %v492
        %v597 = vunpack.c.l.b16 %v493
        %v598 = vunpack.c.h.b16 %v493
        %v599 = vunpack.c.l.b16 %v494
        %v600 = vunpack.c.h.b16 %v494
        %v601 = vunpack.c.l.b16 %v495
        %v602 = vunpack.c.h.b16 %v495
        %v603 = vunpack.c.l.b16 %v496
        %v604 = vunpack.c.h.b16 %v496
        %v605 = vunpack.c.l.b16 %v497
        %v606 = vunpack.c.h.b16 %v497
        %v607 = vpack.c.b16 %v545, %v543
        %v608 = vpack.c.b16 %v546, %v544
        %v609 = vpack.c.b16 %v549, %v547
        %v610 = vpack.c.b16 %v550, %v548
        %v611 = vpack.c.b16 %v553, %v551
        %v612 = vpack.c.b16 %v554, %v552
        %v613 = vpack.c.b16 %v557, %v555
        %v614 = vpack.c.b16 %v558, %v556
        %v615 = vpack.c.b16 %v561, %v559
        %v616 = vpack.c.b16 %v562, %v560
        %v617 = vpack.c.b16 %v565, %v563
        %v618 = vpack.c.b16 %v566, %v564
        %v619 = vpack.c.b16 %v569, %v567
        %v620 = vpack.c.b16 %v570, %v568
        %v621 = vpack.c.b16 %v573, %v571
        %v622 = vpack.c.b16 %v574, %v572
        %v623 = vpack.c.b16 %v577, %v575
        %v624 = vpack.c.b16 %v578, %v576
        %v625 = vpack.c.b16 %v581, %v579
        %v626 = vpack.c.b16 %v582, %v580
        %v627 = vpack.c.b16 %v585, %v583
        %v628 = vpack.c.b16 %v586, %v584
        %v629 = vpack.c.b16 %v589, %v587
        %v630 = vpack.c.b16 %v590, %v588
        %v631 = vpack.c.b16 %v593, %v591
        %v632 = vpack.c.b16 %v594, %v592
        %v633 = vpack.c.b16 %v597, %v595
        %v634 = vpack.c.b16 %v598, %v596
        %v635 = vpack.c.b16 %v601, %v599
        %v636 = vpack.c.b16 %v602, %v600
        %v637 = vpack.c.b16 %v605, %v603
        %v638 = vpack.c.b16 %v606, %v604
        %671 = vmatprep.subr.bf16.mxu0 %v608
        %672 = vmatpush1.bf16.msra.mxu0 %v607
        %673 = vmatprep.subr.bf16.mxu0 %v610
        %674 = vmatpush1.bf16.msra.mxu0 %v609
        %675 = vmatprep.subr.bf16.mxu0 %v612
        %676 = vmatpush1.bf16.msra.mxu0 %v611
        %677 = vmatprep.subr.bf16.mxu0 %v614
        %678 = vmatpush1.bf16.msra.mxu0 %v613
        %679 = vmatprep.subr.bf16.mxu0 %v616
        %680 = vmatpush1.bf16.msra.mxu0 %v615
        %681 = vmatprep.subr.bf16.mxu0 %v618
        %682 = vmatpush1.bf16.msra.mxu0 %v617
        %683 = vmatprep.subr.bf16.mxu0 %v620
        %684 = vmatpush1.bf16.msra.mxu0 %v619
        %685 = vmatprep.subr.bf16.mxu0 %v622
        %686 = vmatpush1.bf16.msra.mxu0 %v621
        %687 = vmatprep.subr.bf16.mxu0 %v624
        %688 = vmatpush1.bf16.msra.mxu0 %v623
        %689 = vmatprep.subr.bf16.mxu0 %v626
        %690 = vmatpush1.bf16.msra.mxu0 %v625
        %691 = vmatprep.subr.bf16.mxu0 %v628
        %692 = vmatpush1.bf16.msra.mxu0 %v627
        %693 = vmatprep.subr.bf16.mxu0 %v630
        %694 = vmatpush1.bf16.msra.mxu0 %v629
        %695 = vmatprep.subr.bf16.mxu0 %v632
        %696 = vmatpush1.bf16.msra.mxu0 %v631
        %697 = vmatprep.subr.bf16.mxu0 %v634
        %698 = vmatpush1.bf16.msra.mxu0 %v633
        %699 = vmatprep.subr.bf16.mxu0 %v636
        %700 = vmatpush1.bf16.msra.mxu0 %v635
        %701 = vmatprep.subr.bf16.mxu0 %v638
        %702 = vmatpush1.bf16.msra.mxu0 %v637
        %703 = vmatprep.mubr.bf16.mxu0 %v453
        %704 = vmatmul.mubr.bf16.gmra.mrb[0].mxu0 %v452
        %v705 = vpop.f32.mrb[0].mxu0
        %v706 = vadd.f32 %v504, %v705
        %v707 = vpop.f32.mrb[0].mxu0
        %v708 = vadd.f32 %v508, %v707
        %v709 = vpop.f32.mrb[0].mxu0
        %v710 = vadd.f32 %v504, %v709
        %v711 = vpop.f32.mrb[0].mxu0
        %v712 = vadd.f32 %v508, %v711
        %713 = vmatprep.mubr.bf16.mxu0 %v455
        %714 = vmatmul.mubr.bf16.gmra.mrb[0].mxu0 %v454
        %v715 = vpop.f32.mrb[0].mxu0
        %v716 = vadd.f32 %v504, %v715
        %v717 = vpop.f32.mrb[0].mxu0
        %v718 = vadd.f32 %v508, %v717
        %v719 = vpop.f32.mrb[0].mxu0
        %v720 = vadd.f32 %v504, %v719
        %v721 = vpop.f32.mrb[0].mxu0
        %v722 = vadd.f32 %v508, %v721
        %723 = vmatprep.mubr.bf16.mxu0 %v457
        %724 = vmatmul.mubr.bf16.gmra.mrb[0].mxu0 %v456
        %v725 = vpop.f32.mrb[0].mxu0
        %v726 = vadd.f32 %v504, %v725
        %v727 = vpop.f32.mrb[0].mxu0
        %v728 = vadd.f32 %v508, %v727
        %v729 = vpop.f32.mrb[0].mxu0
        %v730 = vadd.f32 %v504, %v729
        %v731 = vpop.f32.mrb[0].mxu0
        %v732 = vadd.f32 %v508, %v731
        %733 = vmatprep.mubr.bf16.mxu0 %v459
        %734 = vmatmul.mubr.bf16.gmra.mrb[0].mxu0 %v458
        %v735 = vpop.f32.mrb[0].mxu0
        %v736 = vadd.f32 %v504, %v735
        %v737 = vpop.f32.mrb[0].mxu0
        %v738 = vadd.f32 %v508, %v737
        %v739 = vpop.f32.mrb[0].mxu0
        %v740 = vadd.f32 %v504, %v739
        %v741 = vpop.f32.mrb[0].mxu0
        %v742 = vadd.f32 %v508, %v741
        %743 = vmatprep.mubr.bf16.mxu0 %v461
        %744 = vmatmul.mubr.bf16.gmra.mrb[0].mxu0 %v460
        %v745 = vpop.f32.mrb[0].mxu0
        %v746 = vadd.f32 %v504, %v745
        %v747 = vpop.f32.mrb[0].mxu0
        %v748 = vadd.f32 %v508, %v747
        %v749 = vpop.f32.mrb[0].mxu0
        %v750 = vadd.f32 %v504, %v749
        %v751 = vpop.f32.mrb[0].mxu0
        %v752 = vadd.f32 %v508, %v751
        %753 = vmatprep.mubr.bf16.mxu0 %v463
        %754 = vmatmul.mubr.bf16.gmra.mrb[0].mxu0 %v462
        %v755 = vpop.f32.mrb[0].mxu0
        %v756 = vadd.f32 %v504, %v755
        %v757 = vpop.f32.mrb[0].mxu0
        %v758 = vadd.f32 %v508, %v757
        %v759 = vpop.f32.mrb[0].mxu0
        %v760 = vadd.f32 %v504, %v759
        %v761 = vpop.f32.mrb[0].mxu0
        %v762 = vadd.f32 %v508, %v761
        %763 = vmatprep.mubr.bf16.mxu0 %v465
        %764 = vmatmul.mubr.bf16.gmra.mrb[0].mxu0 %v464
        %v765 = vpop.f32.mrb[0].mxu0
        %v766 = vadd.f32 %v504, %v765
        %v767 = vpop.f32.mrb[0].mxu0
        %v768 = vadd.f32 %v508, %v767
        %v769 = vpop.f32.mrb[0].mxu0
        %v770 = vadd.f32 %v504, %v769
        %v771 = vpop.f32.mrb[0].mxu0
        %v772 = vadd.f32 %v508, %v771
        %773 = vdwg.mxu0
        %v774 = vmax.f32 %v706, 0.0
        %v775 = vmax.f32 %v708, 0.0
        %v776 = vmax.f32 %v710, 0.0
        %v777 = vmax.f32 %v712, 0.0
        %v778 = vmax.f32 %v716, 0.0
        %v779 = vmax.f32 %v718, 0.0
        %v780 = vmax.f32 %v720, 0.0
        %v781 = vmax.f32 %v722, 0.0
        %v782 = vmax.f32 %v726, 0.0
        %v783 = vmax.f32 %v728, 0.0
        %v784 = vmax.f32 %v730, 0.0
        %v785 = vmax.f32 %v732, 0.0
        %v786 = vmax.f32 %v736, 0.0
        %v787 = vmax.f32 %v738, 0.0
        %v788 = vmax.f32 %v740, 0.0
        %v789 = vmax.f32 %v742, 0.0
        %v790 = vmax.f32 %v746, 0.0
        %v791 = vmax.f32 %v748, 0.0
        %v792 = vmax.f32 %v750, 0.0
        %v793 = vmax.f32 %v752, 0.0
        %v794 = vmax.f32 %v756, 0.0
        %v795 = vmax.f32 %v758, 0.0
        %v796 = vmax.f32 %v760, 0.0
        %v797 = vmax.f32 %v762, 0.0
        %v798 = vmax.f32 %v766, 0.0
        %v799 = vmax.f32 %v768, 0.0
        %v800 = vmax.f32 %v770, 0.0
        %v801 = vmax.f32 %v772, 0.0
        %v802 = vpack.c.bf16 %v776, %v774
        %v803 = vpack.c.bf16 %v777, %v775
        %v804 = vpack.c.bf16 %v780, %v778
        %v805 = vpack.c.bf16 %v781, %v779
        %v806 = vpack.c.bf16 %v784, %v782
        %v807 = vpack.c.bf16 %v785, %v783
        %v808 = vpack.c.bf16 %v788, %v786
        %v809 = vpack.c.bf16 %v789, %v787
        %v810 = vpack.c.bf16 %v792, %v790
        %v811 = vpack.c.bf16 %v793, %v791
        %v812 = vpack.c.bf16 %v796, %v794
        %v813 = vpack.c.bf16 %v797, %v795
        %v814 = vpack.c.bf16 %v800, %v798
        %v815 = vpack.c.bf16 %v801, %v799
        %v816 = vld [vmem:[#allocation2 + $0x140] sm:$0xff]
        %v817 = vld [vmem:[#allocation2 + $0x148] sm:$0xff]
        %v818 = vld [vmem:[#allocation2 + $0x150] sm:$0xff]
        %v819 = vld [vmem:[#allocation2 + $0x158] sm:$0xff]
        %v820 = vld [vmem:[#allocation2 + $0x160] sm:$0xff]
        %v821 = vld [vmem:[#allocation2 + $0x168] sm:$0xff]
        %v822 = vld [vmem:[#allocation2 + $0x170] sm:$0xff]
        %v823 = vld [vmem:[#allocation2 + $0x178] sm:$0xff]
        %v824 = vld [vmem:[#allocation2 + $0x180] sm:$0xff]
        %v825 = vld [vmem:[#allocation2 + $0x188] sm:$0xff]
        %v826 = vld [vmem:[#allocation2 + $0x190] sm:$0xff]
        %v827 = vld [vmem:[#allocation2 + $0x198] sm:$0xff]
        %v828 = vld [vmem:[#allocation2 + $0x1a0] sm:$0xff]
        %v829 = vld [vmem:[#allocation2 + $0x1a8] sm:$0xff]
        %v830 = vld [vmem:[#allocation2 + $0x1b0] sm:$0xff]
        %v831 = vld [vmem:[#allocation2 + $0x1b8] sm:$0xff]
        %v832 = vld [vmem:[#allocation2 + $0x1c0] sm:$0xff]
        %v833 = vld [vmem:[#allocation2 + $0x1c8] sm:$0xff]
        %v834 = vld [vmem:[#allocation2 + $0x1d0] sm:$0xff]
        %v835 = vld [vmem:[#allocation2 + $0x1d8] sm:$0xff]
        %v836 = vld [vmem:[#allocation2 + $0x1e0] sm:$0xff]
        %v837 = vld [vmem:[#allocation2 + $0x1e8] sm:$0xff]
        %v838 = vld [vmem:[#allocation2 + $0x1f0] sm:$0xff]
        %v839 = vld [vmem:[#allocation2 + $0x1f8] sm:$0xff]
        %v840 = vld [vmem:[#allocation2 + $0x200] sm:$0xff]
        %v841 = vld [vmem:[#allocation2 + $0x208] sm:$0xff]
        %v842 = vld [vmem:[#allocation2 + $0x210] sm:$0xff]
        %v843 = vld [vmem:[#allocation2 + $0x218] sm:$0xff]
        %v844 = vld [vmem:[#allocation2 + $0x220] sm:$0xff]
        %v845 = vld [vmem:[#allocation2 + $0x228] sm:$0xff]
        %v846 = vld [vmem:[#allocation2 + $0x230] sm:$0xff]
        %v847 = vld [vmem:[#allocation2 + $0x238] sm:$0xff]
        %s848 = scalar_lea.vmem %s2, 2
        %v849 = vld [vmem:[%s848] ss:$8 sm:$0x3]
        %v851 = vlaneseq
        %v852 = vshrl.u32 %v851, 7
        %v853 = vsub.s32 0, %v852
        %v854 = vrot.slane %v849, %v853
        %v855 = vlaneseq
        %v856 = vshrl.u32 %v855, 7
        %v857 = vsub.s32 1, %v856
        %v858 = vrot.slane %v849, %v857
        %v893 = vunpack.c.l.b16 %v816
        %v894 = vunpack.c.h.b16 %v816
        %v895 = vunpack.c.l.b16 %v817
        %v896 = vunpack.c.h.b16 %v817
        %v897 = vunpack.c.l.b16 %v818
        %v898 = vunpack.c.h.b16 %v818
        %v899 = vunpack.c.l.b16 %v819
        %v900 = vunpack.c.h.b16 %v819
        %v901 = vunpack.c.l.b16 %v820
        %v902 = vunpack.c.h.b16 %v820
        %v903 = vunpack.c.l.b16 %v821
        %v904 = vunpack.c.h.b16 %v821
        %v905 = vunpack.c.l.b16 %v822
        %v906 = vunpack.c.h.b16 %v822
        %v907 = vunpack.c.l.b16 %v823
        %v908 = vunpack.c.h.b16 %v823
        %v909 = vunpack.c.l.b16 %v824
        %v910 = vunpack.c.h.b16 %v824
        %v911 = vunpack.c.l.b16 %v825
        %v912 = vunpack.c.h.b16 %v825
        %v913 = vunpack.c.l.b16 %v826
        %v914 = vunpack.c.h.b16 %v826
        %v915 = vunpack.c.l.b16 %v827
        %v916 = vunpack.c.h.b16 %v827
        %v917 = vunpack.c.l.b16 %v828
        %v918 = vunpack.c.h.b16 %v828
        %v919 = vunpack.c.l.b16 %v829
        %v920 = vunpack.c.h.b16 %v829
        %v921 = vunpack.c.l.b16 %v830
        %v922 = vunpack.c.h.b16 %v830
        %v923 = vunpack.c.l.b16 %v831
        %v924 = vunpack.c.h.b16 %v831
        %v925 = vunpack.c.l.b16 %v832
        %v926 = vunpack.c.h.b16 %v832
        %v927 = vunpack.c.l.b16 %v833
        %v928 = vunpack.c.h.b16 %v833
        %v929 = vunpack.c.l.b16 %v834
        %v930 = vunpack.c.h.b16 %v834
        %v931 = vunpack.c.l.b16 %v835
        %v932 = vunpack.c.h.b16 %v835
        %v933 = vunpack.c.l.b16 %v836
        %v934 = vunpack.c.h.b16 %v836
        %v935 = vunpack.c.l.b16 %v837
        %v936 = vunpack.c.h.b16 %v837
        %v937 = vunpack.c.l.b16 %v838
        %v938 = vunpack.c.h.b16 %v838
        %v939 = vunpack.c.l.b16 %v839
        %v940 = vunpack.c.h.b16 %v839
        %v941 = vunpack.c.l.b16 %v840
        %v942 = vunpack.c.h.b16 %v840
        %v943 = vunpack.c.l.b16 %v841
        %v944 = vunpack.c.h.b16 %v841
        %v945 = vunpack.c.l.b16 %v842
        %v946 = vunpack.c.h.b16 %v842
        %v947 = vunpack.c.l.b16 %v843
        %v948 = vunpack.c.h.b16 %v843
        %v949 = vunpack.c.l.b16 %v844
        %v950 = vunpack.c.h.b16 %v844
        %v951 = vunpack.c.l.b16 %v845
        %v952 = vunpack.c.h.b16 %v845
        %v953 = vunpack.c.l.b16 %v846
        %v954 = vunpack.c.h.b16 %v846
        %v955 = vunpack.c.l.b16 %v847
        %v956 = vunpack.c.h.b16 %v847
        %v957 = vpack.c.b16 %v895, %v893
        %v958 = vpack.c.b16 %v896, %v894
        %v959 = vpack.c.b16 %v899, %v897
        %v960 = vpack.c.b16 %v900, %v898
        %v961 = vpack.c.b16 %v903, %v901
        %v962 = vpack.c.b16 %v904, %v902
        %v963 = vpack.c.b16 %v907, %v905
        %v964 = vpack.c.b16 %v908, %v906
        %v965 = vpack.c.b16 %v911, %v909
        %v966 = vpack.c.b16 %v912, %v910
        %v967 = vpack.c.b16 %v915, %v913
        %v968 = vpack.c.b16 %v916, %v914
        %v969 = vpack.c.b16 %v919, %v917
        %v970 = vpack.c.b16 %v920, %v918
        %v971 = vpack.c.b16 %v923, %v921
        %v972 = vpack.c.b16 %v924, %v922
        %v973 = vpack.c.b16 %v927, %v925
        %v974 = vpack.c.b16 %v928, %v926
        %v975 = vpack.c.b16 %v931, %v929
        %v976 = vpack.c.b16 %v932, %v930
        %v977 = vpack.c.b16 %v935, %v933
        %v978 = vpack.c.b16 %v936, %v934
        %v979 = vpack.c.b16 %v939, %v937
        %v980 = vpack.c.b16 %v940, %v938
        %v981 = vpack.c.b16 %v943, %v941
        %v982 = vpack.c.b16 %v944, %v942
        %v983 = vpack.c.b16 %v947, %v945
        %v984 = vpack.c.b16 %v948, %v946
        %v985 = vpack.c.b16 %v951, %v949
        %v986 = vpack.c.b16 %v952, %v950
        %v987 = vpack.c.b16 %v955, %v953
        %v988 = vpack.c.b16 %v956, %v954
        %1021 = vmatprep.subr.bf16.mxu0 %v958
        %1022 = vmatpush1.bf16.msra.mxu0 %v957
        %1023 = vmatprep.subr.bf16.mxu0 %v960
        %1024 = vmatpush1.bf16.msra.mxu0 %v959
        %1025 = vmatprep.subr.bf16.mxu0 %v962
        %1026 = vmatpush1.bf16.msra.mxu0 %v961
        %1027 = vmatprep.subr.bf16.mxu0 %v964
        %1028 = vmatpush1.bf16.msra.mxu0 %v963
        %1029 = vmatprep.subr.bf16.mxu0 %v966
        %1030 = vmatpush1.bf16.msra.mxu0 %v965
        %1031 = vmatprep.subr.bf16.mxu0 %v968
        %1032 = vmatpush1.bf16.msra.mxu0 %v967
        %1033 = vmatprep.subr.bf16.mxu0 %v970
        %1034 = vmatpush1.bf16.msra.mxu0 %v969
        %1035 = vmatprep.subr.bf16.mxu0 %v972
        %1036 = vmatpush1.bf16.msra.mxu0 %v971
        %1037 = vmatprep.subr.bf16.mxu0 %v974
        %1038 = vmatpush1.bf16.msra.mxu0 %v973
        %1039 = vmatprep.subr.bf16.mxu0 %v976
        %1040 = vmatpush1.bf16.msra.mxu0 %v975
        %1041 = vmatprep.subr.bf16.mxu0 %v978
        %1042 = vmatpush1.bf16.msra.mxu0 %v977
        %1043 = vmatprep.subr.bf16.mxu0 %v980
        %1044 = vmatpush1.bf16.msra.mxu0 %v979
        %1045 = vmatprep.subr.bf16.mxu0 %v982
        %1046 = vmatpush1.bf16.msra.mxu0 %v981
        %1047 = vmatprep.subr.bf16.mxu0 %v984
        %1048 = vmatpush1.bf16.msra.mxu0 %v983
        %1049 = vmatprep.subr.bf16.mxu0 %v986
        %1050 = vmatpush1.bf16.msra.mxu0 %v985
        %1051 = vmatprep.subr.bf16.mxu0 %v988
        %1052 = vmatpush1.bf16.msra.mxu0 %v987
        %1053 = vmatprep.mubr.bf16.mxu0 %v803
        %1054 = vmatmul.mubr.bf16.gmra.mrb[0].mxu0 %v802
        %v1055 = vpop.f32.mrb[0].mxu0
        %v1056 = vadd.f32 %v854, %v1055
        %v1057 = vpop.f32.mrb[0].mxu0
        %v1058 = vadd.f32 %v858, %v1057
        %v1059 = vpop.f32.mrb[0].mxu0
        %v1060 = vadd.f32 %v854, %v1059
        %v1061 = vpop.f32.mrb[0].mxu0
        %v1062 = vadd.f32 %v858, %v1061
        %1063 = vmatprep.mubr.bf16.mxu0 %v805
        %1064 = vmatmul.mubr.bf16.gmra.mrb[0].mxu0 %v804
        %v1065 = vpop.f32.mrb[0].mxu0
        %v1066 = vadd.f32 %v854, %v1065
        %v1067 = vpop.f32.mrb[0].mxu0
        %v1068 = vadd.f32 %v858, %v1067
        %v1069 = vpop.f32.mrb[0].mxu0
        %v1070 = vadd.f32 %v854, %v1069
        %v1071 = vpop.f32.mrb[0].mxu0
        %v1072 = vadd.f32 %v858, %v1071
        %1073 = vmatprep.mubr.bf16.mxu0 %v807
        %1074 = vmatmul.mubr.bf16.gmra.mrb[0].mxu0 %v806
        %v1075 = vpop.f32.mrb[0].mxu0
        %v1076 = vadd.f32 %v854, %v1075
        %v1077 = vpop.f32.mrb[0].mxu0
        %v1078 = vadd.f32 %v858, %v1077
        %v1079 = vpop.f32.mrb[0].mxu0
        %v1080 = vadd.f32 %v854, %v1079
        %v1081 = vpop.f32.mrb[0].mxu0
        %v1082 = vadd.f32 %v858, %v1081
        %1083 = vmatprep.mubr.bf16.mxu0 %v809
        %1084 = vmatmul.mubr.bf16.gmra.mrb[0].mxu0 %v808
        %v1085 = vpop.f32.mrb[0].mxu0
        %v1086 = vadd.f32 %v854, %v1085
        %v1087 = vpop.f32.mrb[0].mxu0
        %v1088 = vadd.f32 %v858, %v1087
        %v1089 = vpop.f32.mrb[0].mxu0
        %v1090 = vadd.f32 %v854, %v1089
        %v1091 = vpop.f32.mrb[0].mxu0
        %v1092 = vadd.f32 %v858, %v1091
        %1093 = vmatprep.mubr.bf16.mxu0 %v811
        %1094 = vmatmul.mubr.bf16.gmra.mrb[0].mxu0 %v810
        %v1095 = vpop.f32.mrb[0].mxu0
        %v1096 = vadd.f32 %v854, %v1095
        %v1097 = vpop.f32.mrb[0].mxu0
        %v1098 = vadd.f32 %v858, %v1097
        %v1099 = vpop.f32.mrb[0].mxu0
        %v1100 = vadd.f32 %v854, %v1099
        %v1101 = vpop.f32.mrb[0].mxu0
        %v1102 = vadd.f32 %v858, %v1101
        %1103 = vmatprep.mubr.bf16.mxu0 %v813
        %1104 = vmatmul.mubr.bf16.gmra.mrb[0].mxu0 %v812
        %v1105 = vpop.f32.mrb[0].mxu0
        %v1106 = vadd.f32 %v854, %v1105
        %v1107 = vpop.f32.mrb[0].mxu0
        %v1108 = vadd.f32 %v858, %v1107
        %v1109 = vpop.f32.mrb[0].mxu0
        %v1110 = vadd.f32 %v854, %v1109
        %v1111 = vpop.f32.mrb[0].mxu0
        %v1112 = vadd.f32 %v858, %v1111
        %1113 = vmatprep.mubr.bf16.mxu0 %v815
        %1114 = vmatmul.mubr.bf16.gmra.mrb[0].mxu0 %v814
        %v1115 = vpop.f32.mrb[0].mxu0
        %v1116 = vadd.f32 %v854, %v1115
        %v1117 = vpop.f32.mrb[0].mxu0
        %v1118 = vadd.f32 %v858, %v1117
        %v1119 = vpop.f32.mrb[0].mxu0
        %v1120 = vadd.f32 %v854, %v1119
        %v1121 = vpop.f32.mrb[0].mxu0
        %v1122 = vadd.f32 %v858, %v1121
        %1123 = vdwg.mxu0
        %v1124 = vmax.f32 %v1056, 0.0
        %v1125 = vmax.f32 %v1058, 0.0
        %v1126 = vmax.f32 %v1060, 0.0
        %v1127 = vmax.f32 %v1062, 0.0
        %v1128 = vmax.f32 %v1066, 0.0
        %v1129 = vmax.f32 %v1068, 0.0
        %v1130 = vmax.f32 %v1070, 0.0
        %v1131 = vmax.f32 %v1072, 0.0
        %v1132 = vmax.f32 %v1076, 0.0
        %v1133 = vmax.f32 %v1078, 0.0
        %v1134 = vmax.f32 %v1080, 0.0
        %v1135 = vmax.f32 %v1082, 0.0
        %v1136 = vmax.f32 %v1086, 0.0
        %v1137 = vmax.f32 %v1088, 0.0
        %v1138 = vmax.f32 %v1090, 0.0
        %v1139 = vmax.f32 %v1092, 0.0
        %v1140 = vmax.f32 %v1096, 0.0
        %v1141 = vmax.f32 %v1098, 0.0
        %v1142 = vmax.f32 %v1100, 0.0
        %v1143 = vmax.f32 %v1102, 0.0
        %v1144 = vmax.f32 %v1106, 0.0
        %v1145 = vmax.f32 %v1108, 0.0
        %v1146 = vmax.f32 %v1110, 0.0
        %v1147 = vmax.f32 %v1112, 0.0
        %v1148 = vmax.f32 %v1116, 0.0
        %v1149 = vmax.f32 %v1118, 0.0
        %v1150 = vmax.f32 %v1120, 0.0
        %v1151 = vmax.f32 %v1122, 0.0
        %v1152 = vpack.c.bf16 %v1126, %v1124
        %v1153 = vpack.c.bf16 %v1127, %v1125
        %v1154 = vpack.c.bf16 %v1130, %v1128
        %v1155 = vpack.c.bf16 %v1131, %v1129
        %v1156 = vpack.c.bf16 %v1134, %v1132
        %v1157 = vpack.c.bf16 %v1135, %v1133
        %v1158 = vpack.c.bf16 %v1138, %v1136
        %v1159 = vpack.c.bf16 %v1139, %v1137
        %v1160 = vpack.c.bf16 %v1142, %v1140
        %v1161 = vpack.c.bf16 %v1143, %v1141
        %v1162 = vpack.c.bf16 %v1146, %v1144
        %v1163 = vpack.c.bf16 %v1147, %v1145
        %v1164 = vpack.c.bf16 %v1150, %v1148
        %v1165 = vpack.c.bf16 %v1151, %v1149
        %v1166 = vld [vmem:[#allocation2 + $0x240] sm:$0xf]
        %v1167 = vld [vmem:[#allocation2 + $0x248] sm:$0xf]
        %v1168 = vld [vmem:[#allocation2 + $0x250] sm:$0xf]
        %v1169 = vld [vmem:[#allocation2 + $0x258] sm:$0xf]
        %v1170 = vld [vmem:[#allocation2 + $0x260] sm:$0xf]
        %v1171 = vld [vmem:[#allocation2 + $0x268] sm:$0xf]
        %v1172 = vld [vmem:[#allocation2 + $0x270] sm:$0xf]
        %v1173 = vld [vmem:[#allocation2 + $0x278] sm:$0xf]
        %v1174 = vld [vmem:[#allocation2 + $0x280] sm:$0xf]
        %v1175 = vld [vmem:[#allocation2 + $0x288] sm:$0xf]
        %v1176 = vld [vmem:[#allocation2 + $0x290] sm:$0xf]
        %v1177 = vld [vmem:[#allocation2 + $0x298] sm:$0xf]
        %v1178 = vld [vmem:[#allocation2 + $0x2a0] sm:$0xf]
        %v1179 = vld [vmem:[#allocation2 + $0x2a8] sm:$0xf]
        %v1180 = vld [vmem:[#allocation2 + $0x2b0] sm:$0xf]
        %v1181 = vld [vmem:[#allocation2 + $0x2b8] sm:$0xf]
        %v1182 = vld [vmem:[#allocation2 + $0x2c0] sm:$0xf]
        %v1183 = vld [vmem:[#allocation2 + $0x2c8] sm:$0xf]
        %v1184 = vld [vmem:[#allocation2 + $0x2d0] sm:$0xf]
        %v1185 = vld [vmem:[#allocation2 + $0x2d8] sm:$0xf]
        %v1186 = vld [vmem:[#allocation2 + $0x2e0] sm:$0xf]
        %v1187 = vld [vmem:[#allocation2 + $0x2e8] sm:$0xf]
        %v1188 = vld [vmem:[#allocation2 + $0x2f0] sm:$0xf]
        %v1189 = vld [vmem:[#allocation2 + $0x2f8] sm:$0xf]
        %v1190 = vld [vmem:[#allocation2 + $0x300] sm:$0xf]
        %v1191 = vld [vmem:[#allocation2 + $0x308] sm:$0xf]
        %v1192 = vld [vmem:[#allocation2 + $0x310] sm:$0xf]
        %v1193 = vld [vmem:[#allocation2 + $0x318] sm:$0xf]
        %v1194 = vld [vmem:[#allocation2 + $0x320] sm:$0xf]
        %v1195 = vld [vmem:[#allocation2 + $0x328] sm:$0xf]
        %v1196 = vld [vmem:[#allocation2 + $0x330] sm:$0xf]
        %v1197 = vld [vmem:[#allocation2 + $0x338] sm:$0xf]
        %v1198 = vld [vmem:[%s2 + $0x3] ss:$0 sm:$0xff]
        %v1231 = vunpack.c.l.b16 %v1166
        %v1232 = vunpack.c.l.b16 %v1167
        %v1233 = vunpack.c.l.b16 %v1168
        %v1234 = vunpack.c.l.b16 %v1169
        %v1235 = vunpack.c.l.b16 %v1170
        %v1236 = vunpack.c.l.b16 %v1171
        %v1237 = vunpack.c.l.b16 %v1172
        %v1238 = vunpack.c.l.b16 %v1173
        %v1239 = vunpack.c.l.b16 %v1174
        %v1240 = vunpack.c.l.b16 %v1175
        %v1241 = vunpack.c.l.b16 %v1176
        %v1242 = vunpack.c.l.b16 %v1177
        %v1243 = vunpack.c.l.b16 %v1178
        %v1244 = vunpack.c.l.b16 %v1179
        %v1245 = vunpack.c.l.b16 %v1180
        %v1246 = vunpack.c.l.b16 %v1181
        %v1247 = vunpack.c.l.b16 %v1182
        %v1248 = vunpack.c.l.b16 %v1183
        %v1249 = vunpack.c.l.b16 %v1184
        %v1250 = vunpack.c.l.b16 %v1185
        %v1251 = vunpack.c.l.b16 %v1186
        %v1252 = vunpack.c.l.b16 %v1187
        %v1253 = vunpack.c.l.b16 %v1188
        %v1254 = vunpack.c.l.b16 %v1189
        %v1255 = vunpack.c.l.b16 %v1190
        %v1256 = vunpack.c.l.b16 %v1191
        %v1257 = vunpack.c.l.b16 %v1192
        %v1258 = vunpack.c.l.b16 %v1193
        %v1259 = vunpack.c.l.b16 %v1194
        %v1260 = vunpack.c.l.b16 %v1195
        %v1261 = vunpack.c.l.b16 %v1196
        %v1262 = vunpack.c.l.b16 %v1197
        %v1263 = vpack.c.b16 %v1232, %v1231
        %v1264 = vpack.c.b16 %v1234, %v1233
        %v1265 = vpack.c.b16 %v1236, %v1235
        %v1266 = vpack.c.b16 %v1238, %v1237
        %v1267 = vpack.c.b16 %v1240, %v1239
        %v1268 = vpack.c.b16 %v1242, %v1241
        %v1269 = vpack.c.b16 %v1244, %v1243
        %v1270 = vpack.c.b16 %v1246, %v1245
        %v1271 = vpack.c.b16 %v1248, %v1247
        %v1272 = vpack.c.b16 %v1250, %v1249
        %v1273 = vpack.c.b16 %v1252, %v1251
        %v1274 = vpack.c.b16 %v1254, %v1253
        %v1275 = vpack.c.b16 %v1256, %v1255
        %v1276 = vpack.c.b16 %v1258, %v1257
        %v1277 = vpack.c.b16 %v1260, %v1259
        %v1278 = vpack.c.b16 %v1262, %v1261
        %1295 = vmatprep.subr.bf16.mxu0 0
        %1296 = vmatpush1.bf16.msra.mxu0 %v1263
        %1297 = vmatprep.subr.bf16.mxu0 0
        %1298 = vmatpush1.bf16.msra.mxu0 %v1264
        %1299 = vmatprep.subr.bf16.mxu0 0
        %1300 = vmatpush1.bf16.msra.mxu0 %v1265
        %1301 = vmatprep.subr.bf16.mxu0 0
        %1302 = vmatpush1.bf16.msra.mxu0 %v1266
        %1303 = vmatprep.subr.bf16.mxu0 0
        %1304 = vmatpush1.bf16.msra.mxu0 %v1267
        %1305 = vmatprep.subr.bf16.mxu0 0
        %1306 = vmatpush1.bf16.msra.mxu0 %v1268
        %1307 = vmatprep.subr.bf16.mxu0 0
        %1308 = vmatpush1.bf16.msra.mxu0 %v1269
        %1309 = vmatprep.subr.bf16.mxu0 0
        %1310 = vmatpush1.bf16.msra.mxu0 %v1270
        %1311 = vmatprep.subr.bf16.mxu0 0
        %1312 = vmatpush1.bf16.msra.mxu0 %v1271
        %1313 = vmatprep.subr.bf16.mxu0 0
        %1314 = vmatpush1.bf16.msra.mxu0 %v1272
        %1315 = vmatprep.subr.bf16.mxu0 0
        %1316 = vmatpush1.bf16.msra.mxu0 %v1273
        %1317 = vmatprep.subr.bf16.mxu0 0
        %1318 = vmatpush1.bf16.msra.mxu0 %v1274
        %1319 = vmatprep.subr.bf16.mxu0 0
        %1320 = vmatpush1.bf16.msra.mxu0 %v1275
        %1321 = vmatprep.subr.bf16.mxu0 0
        %1322 = vmatpush1.bf16.msra.mxu0 %v1276
        %1323 = vmatprep.subr.bf16.mxu0 0
        %1324 = vmatpush1.bf16.msra.mxu0 %v1277
        %1325 = vmatprep.subr.bf16.mxu0 0
        %1326 = vmatpush1.bf16.msra.mxu0 %v1278
        %1327 = vmatprep.mubr.bf16.mxu0 %v1153
        %1328 = vmatmul.mubr.bf16.gmra.mrb[0].mxu0 %v1152
        %v1329 = vpop.f32.mrb[0].mxu0
        %v1330 = vadd.f32 %v1198, %v1329
        %v1331 = vpop.f32.mrb[0].mxu0
        %v1332 = vpop.f32.mrb[0].mxu0
        %v1333 = vadd.f32 %v1198, %v1332
        %v1334 = vpop.f32.mrb[0].mxu0
        %1335 = vmatprep.mubr.bf16.mxu0 %v1155
        %1336 = vmatmul.mubr.bf16.gmra.mrb[0].mxu0 %v1154
        %v1337 = vpop.f32.mrb[0].mxu0
        %v1338 = vadd.f32 %v1198, %v1337
        %v1339 = vpop.f32.mrb[0].mxu0
        %v1340 = vpop.f32.mrb[0].mxu0
        %v1341 = vadd.f32 %v1198, %v1340
        %v1342 = vpop.f32.mrb[0].mxu0
        %1343 = vmatprep.mubr.bf16.mxu0 %v1157
        %1344 = vmatmul.mubr.bf16.gmra.mrb[0].mxu0 %v1156
        %v1345 = vpop.f32.mrb[0].mxu0
        %v1346 = vadd.f32 %v1198, %v1345
        %v1347 = vpop.f32.mrb[0].mxu0
        %v1348 = vpop.f32.mrb[0].mxu0
        %v1349 = vadd.f32 %v1198, %v1348
        %v1350 = vpop.f32.mrb[0].mxu0
        %1351 = vmatprep.mubr.bf16.mxu0 %v1159
        %1352 = vmatmul.mubr.bf16.gmra.mrb[0].mxu0 %v1158
        %v1353 = vpop.f32.mrb[0].mxu0
        %v1354 = vadd.f32 %v1198, %v1353
        %v1355 = vpop.f32.mrb[0].mxu0
        %v1356 = vpop.f32.mrb[0].mxu0
        %v1357 = vadd.f32 %v1198, %v1356
        %v1358 = vpop.f32.mrb[0].mxu0
        %1359 = vmatprep.mubr.bf16.mxu0 %v1161
        %1360 = vmatmul.mubr.bf16.gmra.mrb[0].mxu0 %v1160
        %v1361 = vpop.f32.mrb[0].mxu0
        %v1362 = vadd.f32 %v1198, %v1361
        %v1363 = vpop.f32.mrb[0].mxu0
        %v1364 = vpop.f32.mrb[0].mxu0
        %v1365 = vadd.f32 %v1198, %v1364
        %v1366 = vpop.f32.mrb[0].mxu0
        %1367 = vmatprep.mubr.bf16.mxu0 %v1163
        %1368 = vmatmul.mubr.bf16.gmra.mrb[0].mxu0 %v1162
        %v1369 = vpop.f32.mrb[0].mxu0
        %v1370 = vadd.f32 %v1198, %v1369
        %v1371 = vpop.f32.mrb[0].mxu0
        %v1372 = vpop.f32.mrb[0].mxu0
        %v1373 = vadd.f32 %v1198, %v1372
        %v1374 = vpop.f32.mrb[0].mxu0
        %1375 = vmatprep.mubr.bf16.mxu0 %v1165
        %1376 = vmatmul.mubr.bf16.gmra.mrb[0].mxu0 %v1164
        %v1377 = vpop.f32.mrb[0].mxu0
        %v1378 = vadd.f32 %v1198, %v1377
        %v1379 = vpop.f32.mrb[0].mxu0
        %v1380 = vpop.f32.mrb[0].mxu0
        %v1381 = vadd.f32 %v1198, %v1380
        %v1382 = vpop.f32.mrb[0].mxu0
        %1383 = vdwg.mxu0
        %v1384 = vmax.f32 %v1330, 0.0
        %v1385 = vmax.f32 %v1333, 0.0
        %v1386 = vmax.f32 %v1338, 0.0
        %v1387 = vmax.f32 %v1341, 0.0
        %v1388 = vmax.f32 %v1346, 0.0
        %v1389 = vmax.f32 %v1349, 0.0
        %v1390 = vmax.f32 %v1354, 0.0
        %v1391 = vmax.f32 %v1357, 0.0
        %v1392 = vmax.f32 %v1362, 0.0
        %v1393 = vmax.f32 %v1365, 0.0
        %v1394 = vmax.f32 %v1370, 0.0
        %v1395 = vmax.f32 %v1373, 0.0
        %v1396 = vmax.f32 %v1378, 0.0
        %v1397 = vmax.f32 %v1381, 0.0
        %v1398 = vpack.c.bf16 %v1385, %v1384
        %v1399 = vpack.c.bf16 %v1387, %v1386
        %v1400 = vpack.c.bf16 %v1389, %v1388
        %v1401 = vpack.c.bf16 %v1391, %v1390
        %v1402 = vpack.c.bf16 %v1393, %v1392
        %v1403 = vpack.c.bf16 %v1395, %v1394
        %v1404 = vpack.c.bf16 %v1397, %v1396
        %v1405 = vld [vmem:[#allocation2 + $0x340] sm:$0xf]
        %v1406 = vld [vmem:[#allocation2 + $0x348] sm:$0xf]
        %v1407 = vld [vmem:[#allocation2 + $0x350] sm:$0xf]
        %v1408 = vld [vmem:[#allocation2 + $0x358] sm:$0xf]
        %v1409 = vld [vmem:[#allocation2 + $0x360] sm:$0xf]
        %v1410 = vld [vmem:[#allocation2 + $0x368] sm:$0xf]
        %v1411 = vld [vmem:[#allocation2 + $0x370] sm:$0xf]
        %v1412 = vld [vmem:[#allocation2 + $0x378] sm:$0xf]
        %v1413 = vld [vmem:[#allocation2 + $0x380] sm:$0xf]
        %v1414 = vld [vmem:[#allocation2 + $0x388] sm:$0xf]
        %v1415 = vld [vmem:[#allocation2 + $0x390] sm:$0xf]
        %v1416 = vld [vmem:[#allocation2 + $0x398] sm:$0xf]
        %v1417 = vld [vmem:[#allocation2 + $0x3a0] sm:$0xf]
        %v1418 = vld [vmem:[#allocation2 + $0x3a8] sm:$0xf]
        %v1419 = vld [vmem:[#allocation2 + $0x3b0] sm:$0xf]
        %v1420 = vld [vmem:[#allocation2 + $0x3b8] sm:$0xf]
        %v1421 = vld [vmem:[%s2 + $0x4] ss:$0 sm:$0xff]
        %v1438 = vunpack.c.l.b16 %v1405
        %v1439 = vunpack.c.l.b16 %v1406
        %v1440 = vunpack.c.l.b16 %v1407
        %v1441 = vunpack.c.l.b16 %v1408
        %v1442 = vunpack.c.l.b16 %v1409
        %v1443 = vunpack.c.l.b16 %v1410
        %v1444 = vunpack.c.l.b16 %v1411
        %v1445 = vunpack.c.l.b16 %v1412
        %v1446 = vunpack.c.l.b16 %v1413
        %v1447 = vunpack.c.l.b16 %v1414
        %v1448 = vunpack.c.l.b16 %v1415
        %v1449 = vunpack.c.l.b16 %v1416
        %v1450 = vunpack.c.l.b16 %v1417
        %v1451 = vunpack.c.l.b16 %v1418
        %v1452 = vunpack.c.l.b16 %v1419
        %v1453 = vunpack.c.l.b16 %v1420
        %v1454 = vpack.c.b16 %v1439, %v1438
        %v1455 = vpack.c.b16 %v1441, %v1440
        %v1456 = vpack.c.b16 %v1443, %v1442
        %v1457 = vpack.c.b16 %v1445, %v1444
        %v1458 = vpack.c.b16 %v1447, %v1446
        %v1459 = vpack.c.b16 %v1449, %v1448
        %v1460 = vpack.c.b16 %v1451, %v1450
        %v1461 = vpack.c.b16 %v1453, %v1452
        %1470 = vmatprep.subr.bf16.mxu0 0
        %1471 = vmatpush1.bf16.msra.mxu0 %v1454
        %1472 = vmatprep.subr.bf16.mxu0 0
        %1473 = vmatpush1.bf16.msra.mxu0 %v1455
        %1474 = vmatprep.subr.bf16.mxu0 0
        %1475 = vmatpush1.bf16.msra.mxu0 %v1456
        %1476 = vmatprep.subr.bf16.mxu0 0
        %1477 = vmatpush1.bf16.msra.mxu0 %v1457
        %1478 = vmatprep.subr.bf16.mxu0 0
        %1479 = vmatpush1.bf16.msra.mxu0 %v1458
        %1480 = vmatprep.subr.bf16.mxu0 0
        %1481 = vmatpush1.bf16.msra.mxu0 %v1459
        %1482 = vmatprep.subr.bf16.mxu0 0
        %1483 = vmatpush1.bf16.msra.mxu0 %v1460
        %1484 = vmatprep.subr.bf16.mxu0 0
        %1485 = vmatpush1.bf16.msra.mxu0 %v1461
        %1486 = vmatprep.subr.bf16.mxu0 0
        %1487 = vmatpush1.bf16.msra.mxu0 0
        %1488 = vmatprep.subr.bf16.mxu0 0
        %1489 = vmatpush1.bf16.msra.mxu0 0
        %1490 = vmatprep.subr.bf16.mxu0 0
        %1491 = vmatpush1.bf16.msra.mxu0 0
        %1492 = vmatprep.subr.bf16.mxu0 0
        %1493 = vmatpush1.bf16.msra.mxu0 0
        %1494 = vmatprep.subr.bf16.mxu0 0
        %1495 = vmatpush1.bf16.msra.mxu0 0
        %1496 = vmatprep.subr.bf16.mxu0 0
        %1497 = vmatpush1.bf16.msra.mxu0 0
        %1498 = vmatprep.subr.bf16.mxu0 0
        %1499 = vmatpush1.bf16.msra.mxu0 0
        %1500 = vmatprep.subr.bf16.mxu0 0
        %1501 = vmatpush1.bf16.msra.mxu0 0
        %1502 = vmatprep.mubr.bf16.mxu0 0
        %1503 = vmatmul.mubr.bf16.gmra.mrb[0].mxu0 %v1398
        %v1504 = vpop.f32.mrb[0].mxu0
        %v1505 = vadd.f32 %v1421, %v1504
        %v1506 = vpop.f32.mrb[0].mxu0
        %v1507 = vpop.f32.mrb[0].mxu0
        %v1508 = vadd.f32 %v1421, %v1507
        %v1509 = vpop.f32.mrb[0].mxu0
        %1510 = vmatprep.mubr.bf16.mxu0 0
        %1511 = vmatmul.mubr.bf16.gmra.mrb[0].mxu0 %v1399
        %v1512 = vpop.f32.mrb[0].mxu0
        %v1513 = vadd.f32 %v1421, %v1512
        %v1514 = vpop.f32.mrb[0].mxu0
        %v1515 = vpop.f32.mrb[0].mxu0
        %v1516 = vadd.f32 %v1421, %v1515
        %v1517 = vpop.f32.mrb[0].mxu0
        %1518 = vmatprep.mubr.bf16.mxu0 0
        %1519 = vmatmul.mubr.bf16.gmra.mrb[0].mxu0 %v1400
        %v1520 = vpop.f32.mrb[0].mxu0
        %v1521 = vadd.f32 %v1421, %v1520
        %v1522 = vpop.f32.mrb[0].mxu0
        %v1523 = vpop.f32.mrb[0].mxu0
        %v1524 = vadd.f32 %v1421, %v1523
        %v1525 = vpop.f32.mrb[0].mxu0
        %1526 = vmatprep.mubr.bf16.mxu0 0
        %1527 = vmatmul.mubr.bf16.gmra.mrb[0].mxu0 %v1401
        %v1528 = vpop.f32.mrb[0].mxu0
        %v1529 = vadd.f32 %v1421, %v1528
        %v1530 = vpop.f32.mrb[0].mxu0
        %v1531 = vpop.f32.mrb[0].mxu0
        %v1532 = vadd.f32 %v1421, %v1531
        %v1533 = vpop.f32.mrb[0].mxu0
        %1534 = vmatprep.mubr.bf16.mxu0 0
        %1535 = vmatmul.mubr.bf16.gmra.mrb[0].mxu0 %v1402
        %v1536 = vpop.f32.mrb[0].mxu0
        %v1537 = vadd.f32 %v1421, %v1536
        %v1538 = vpop.f32.mrb[0].mxu0
        %v1539 = vpop.f32.mrb[0].mxu0
        %v1540 = vadd.f32 %v1421, %v1539
        %v1541 = vpop.f32.mrb[0].mxu0
        %1542 = vmatprep.mubr.bf16.mxu0 0
        %1543 = vmatmul.mubr.bf16.gmra.mrb[0].mxu0 %v1403
        %v1544 = vpop.f32.mrb[0].mxu0
        %v1545 = vadd.f32 %v1421, %v1544
        %v1546 = vpop.f32.mrb[0].mxu0
        %v1547 = vpop.f32.mrb[0].mxu0
        %v1548 = vadd.f32 %v1421, %v1547
        %v1549 = vpop.f32.mrb[0].mxu0
        %1550 = vmatprep.mubr.bf16.mxu0 0
        %1551 = vmatmul.mubr.bf16.gmra.mrb[0].mxu0 %v1404
        %v1552 = vpop.f32.mrb[0].mxu0
        %v1553 = vadd.f32 %v1421, %v1552
        %v1554 = vpop.f32.mrb[0].mxu0
        %v1555 = vpop.f32.mrb[0].mxu0
        %v1556 = vadd.f32 %v1421, %v1555
        %v1557 = vpop.f32.mrb[0].mxu0
        %1558 = vdwg.mxu0
        %v1559 = vmax.f32 %v1505, 0.0
        %v1560 = vmax.f32 %v1508, 0.0
        %v1561 = vmax.f32 %v1513, 0.0
        %v1562 = vmax.f32 %v1516, 0.0
        %v1563 = vmax.f32 %v1521, 0.0
        %v1564 = vmax.f32 %v1524, 0.0
        %v1565 = vmax.f32 %v1529, 0.0
        %v1566 = vmax.f32 %v1532, 0.0
        %v1567 = vmax.f32 %v1537, 0.0
        %v1568 = vmax.f32 %v1540, 0.0
        %v1569 = vmax.f32 %v1545, 0.0
        %v1570 = vmax.f32 %v1548, 0.0
        %v1571 = vmax.f32 %v1553, 0.0
        %v1572 = vmax.f32 %v1556, 0.0
        %v1573 = vpack.c.bf16 %v1560, %v1559
        %v1574 = vpack.c.bf16 %v1562, %v1561
        %v1575 = vpack.c.bf16 %v1564, %v1563
        %v1576 = vpack.c.bf16 %v1566, %v1565
        %v1577 = vpack.c.bf16 %v1568, %v1567
        %v1578 = vpack.c.bf16 %v1570, %v1569
        %v1579 = vpack.c.bf16 %v1572, %v1571
        %v1580 = vld [vmem:[#allocation2 + $0x3c0] sm:$0xf]
        %v1581 = vld [vmem:[#allocation2 + $0x3c8] sm:$0xf]
        %v1582 = vld [vmem:[#allocation2 + $0x3d0] sm:$0xf]
        %v1583 = vld [vmem:[#allocation2 + $0x3d8] sm:$0xf]
        %v1584 = vld [vmem:[#allocation2 + $0x3e0] sm:$0xf]
        %v1585 = vld [vmem:[#allocation2 + $0x3e8] sm:$0xf]
        %v1586 = vld [vmem:[#allocation2 + $0x3f0] sm:$0xf]
        %v1587 = vld [vmem:[#allocation2 + $0x3f8] sm:$0xf]
        %v1588 = vld [vmem:[#allocation2 + $0x400] sm:$0xf]
        %v1589 = vld [vmem:[#allocation2 + $0x408] sm:$0xf]
        %v1590 = vld [vmem:[#allocation2 + $0x410] sm:$0xf]
        %v1591 = vld [vmem:[#allocation2 + $0x418] sm:$0xf]
        %v1592 = vld [vmem:[#allocation2 + $0x420] sm:$0xf]
        %v1593 = vld [vmem:[#allocation2 + $0x428] sm:$0xf]
        %v1594 = vld [vmem:[#allocation2 + $0x430] sm:$0xf]
        %v1595 = vld [vmem:[#allocation2 + $0x438] sm:$0xf]
        %v1596 = vld [vmem:[%s2 + $0x5] ss:$0 sm:$0xff]
        %v1613 = vunpack.c.l.b16 %v1580
        %v1614 = vunpack.c.l.b16 %v1581
        %v1615 = vunpack.c.l.b16 %v1582
        %v1616 = vunpack.c.l.b16 %v1583
        %v1617 = vunpack.c.l.b16 %v1584
        %v1618 = vunpack.c.l.b16 %v1585
        %v1619 = vunpack.c.l.b16 %v1586
        %v1620 = vunpack.c.l.b16 %v1587
        %v1621 = vunpack.c.l.b16 %v1588
        %v1622 = vunpack.c.l.b16 %v1589
        %v1623 = vunpack.c.l.b16 %v1590
        %v1624 = vunpack.c.l.b16 %v1591
        %v1625 = vunpack.c.l.b16 %v1592
        %v1626 = vunpack.c.l.b16 %v1593
        %v1627 = vunpack.c.l.b16 %v1594
        %v1628 = vunpack.c.l.b16 %v1595
        %v1629 = vpack.c.b16 %v1614, %v1613
        %v1630 = vpack.c.b16 %v1616, %v1615
        %v1631 = vpack.c.b16 %v1618, %v1617
        %v1632 = vpack.c.b16 %v1620, %v1619
        %v1633 = vpack.c.b16 %v1622, %v1621
        %v1634 = vpack.c.b16 %v1624, %v1623
        %v1635 = vpack.c.b16 %v1626, %v1625
        %v1636 = vpack.c.b16 %v1628, %v1627
        %1645 = vmatprep.subr.bf16.mxu0 0
        %1646 = vmatpush1.bf16.msra.mxu0 %v1629
        %1647 = vmatprep.subr.bf16.mxu0 0
        %1648 = vmatpush1.bf16.msra.mxu0 %v1630
        %1649 = vmatprep.subr.bf16.mxu0 0
        %1650 = vmatpush1.bf16.msra.mxu0 %v1631
        %1651 = vmatprep.subr.bf16.mxu0 0
        %1652 = vmatpush1.bf16.msra.mxu0 %v1632
        %1653 = vmatprep.subr.bf16.mxu0 0
        %1654 = vmatpush1.bf16.msra.mxu0 %v1633
        %1655 = vmatprep.subr.bf16.mxu0 0
        %1656 = vmatpush1.bf16.msra.mxu0 %v1634
        %1657 = vmatprep.subr.bf16.mxu0 0
        %1658 = vmatpush1.bf16.msra.mxu0 %v1635
        %1659 = vmatprep.subr.bf16.mxu0 0
        %1660 = vmatpush1.bf16.msra.mxu0 %v1636
        %1661 = vmatprep.subr.bf16.mxu0 0
        %1662 = vmatpush1.bf16.msra.mxu0 0
        %1663 = vmatprep.subr.bf16.mxu0 0
        %1664 = vmatpush1.bf16.msra.mxu0 0
        %1665 = vmatprep.subr.bf16.mxu0 0
        %1666 = vmatpush1.bf16.msra.mxu0 0
        %1667 = vmatprep.subr.bf16.mxu0 0
        %1668 = vmatpush1.bf16.msra.mxu0 0
        %1669 = vmatprep.subr.bf16.mxu0 0
        %1670 = vmatpush1.bf16.msra.mxu0 0
        %1671 = vmatprep.subr.bf16.mxu0 0
        %1672 = vmatpush1.bf16.msra.mxu0 0
        %1673 = vmatprep.subr.bf16.mxu0 0
        %1674 = vmatpush1.bf16.msra.mxu0 0
        %1675 = vmatprep.subr.bf16.mxu0 0
        %1676 = vmatpush1.bf16.msra.mxu0 0
        %1677 = vmatprep.mubr.bf16.mxu0 0
        %1678 = vmatmul.mubr.bf16.gmra.mrb[0].mxu0 %v1573
        %v1679 = vpop.f32.mrb[0].mxu0
        %v1680 = vadd.f32 %v1596, %v1679
        %v1681 = vpop.f32.mrb[0].mxu0
        %v1682 = vpop.f32.mrb[0].mxu0
        %v1683 = vadd.f32 %v1596, %v1682
        %v1684 = vpop.f32.mrb[0].mxu0
        %1685 = vmatprep.mubr.bf16.mxu0 0
        %1686 = vmatmul.mubr.bf16.gmra.mrb[0].mxu0 %v1574
        %v1687 = vpop.f32.mrb[0].mxu0
        %v1688 = vadd.f32 %v1596, %v1687
        %v1689 = vpop.f32.mrb[0].mxu0
        %v1690 = vpop.f32.mrb[0].mxu0
        %v1691 = vadd.f32 %v1596, %v1690
        %v1692 = vpop.f32.mrb[0].mxu0
        %1693 = vmatprep.mubr.bf16.mxu0 0
        %1694 = vmatmul.mubr.bf16.gmra.mrb[0].mxu0 %v1575
        %v1695 = vpop.f32.mrb[0].mxu0
        %v1696 = vadd.f32 %v1596, %v1695
        %v1697 = vpop.f32.mrb[0].mxu0
        %v1698 = vpop.f32.mrb[0].mxu0
        %v1699 = vadd.f32 %v1596, %v1698
        %v1700 = vpop.f32.mrb[0].mxu0
        %1701 = vmatprep.mubr.bf16.mxu0 0
        %1702 = vmatmul.mubr.bf16.gmra.mrb[0].mxu0 %v1576
        %v1703 = vpop.f32.mrb[0].mxu0
        %v1704 = vadd.f32 %v1596, %v1703
        %v1705 = vpop.f32.mrb[0].mxu0
        %v1706 = vpop.f32.mrb[0].mxu0
        %v1707 = vadd.f32 %v1596, %v1706
        %v1708 = vpop.f32.mrb[0].mxu0
        %1709 = vmatprep.mubr.bf16.mxu0 0
        %1710 = vmatmul.mubr.bf16.gmra.mrb[0].mxu0 %v1577
        %v1711 = vpop.f32.mrb[0].mxu0
        %v1712 = vadd.f32 %v1596, %v1711
        %v1713 = vpop.f32.mrb[0].mxu0
        %v1714 = vpop.f32.mrb[0].mxu0
        %v1715 = vadd.f32 %v1596, %v1714
        %v1716 = vpop.f32.mrb[0].mxu0
        %1717 = vmatprep.mubr.bf16.mxu0 0
        %1718 = vmatmul.mubr.bf16.gmra.mrb[0].mxu0 %v1578
        %v1719 = vpop.f32.mrb[0].mxu0
        %v1720 = vadd.f32 %v1596, %v1719
        %v1721 = vpop.f32.mrb[0].mxu0
        %v1722 = vpop.f32.mrb[0].mxu0
        %v1723 = vadd.f32 %v1596, %v1722
        %v1724 = vpop.f32.mrb[0].mxu0
        %1725 = vmatprep.mubr.bf16.mxu0 0
        %1726 = vmatmul.mubr.bf16.gmra.mrb[0].mxu0 %v1579
        %v1727 = vpop.f32.mrb[0].mxu0
        %v1728 = vadd.f32 %v1596, %v1727
        %v1729 = vpop.f32.mrb[0].mxu0
        %v1730 = vpop.f32.mrb[0].mxu0
        %v1731 = vadd.f32 %v1596, %v1730
        %v1732 = vpop.f32.mrb[0].mxu0
        %1733 = vdwg.mxu0
        %v1734 = vmax.f32 %v1680, 0.0
        %v1735 = vmax.f32 %v1683, 0.0
        %v1736 = vmax.f32 %v1688, 0.0
        %v1737 = vmax.f32 %v1691, 0.0
        %v1738 = vmax.f32 %v1696, 0.0
        %v1739 = vmax.f32 %v1699, 0.0
        %v1740 = vmax.f32 %v1704, 0.0
        %v1741 = vmax.f32 %v1707, 0.0
        %v1742 = vmax.f32 %v1712, 0.0
        %v1743 = vmax.f32 %v1715, 0.0
        %v1744 = vmax.f32 %v1720, 0.0
        %v1745 = vmax.f32 %v1723, 0.0
        %v1746 = vmax.f32 %v1728, 0.0
        %v1747 = vmax.f32 %v1731, 0.0
        %v1748 = vpack.c.bf16 %v1735, %v1734
        %v1749 = vpack.c.bf16 %v1737, %v1736
        %v1750 = vpack.c.bf16 %v1739, %v1738
        %v1751 = vpack.c.bf16 %v1741, %v1740
        %v1752 = vpack.c.bf16 %v1743, %v1742
        %v1753 = vpack.c.bf16 %v1745, %v1744
        %v1754 = vpack.c.bf16 %v1747, %v1746
        %v1755 = vld [vmem:[%s2 + $0x6] ss:$0 sm:$0xff]
        %v1756 = vld [vmem:[%s2 + $0x7] ss:$0 sm:$0xff]
        %v1757 = vunpack.c.l.bf16 %v1748
        %v1758 = vunpack.c.h.bf16 %v1748
        %v1759 = vunpack.c.l.bf16 %v1749
        %v1760 = vunpack.c.h.bf16 %v1749
        %v1761 = vunpack.c.l.bf16 %v1750
        %v1762 = vunpack.c.h.bf16 %v1750
        %v1763 = vunpack.c.l.bf16 %v1751
        %v1764 = vunpack.c.h.bf16 %v1751
        %v1765 = vunpack.c.l.bf16 %v1752
        %v1766 = vunpack.c.h.bf16 %v1752
        %v1767 = vunpack.c.l.bf16 %v1753
        %v1768 = vunpack.c.h.bf16 %v1753
        %v1769 = vunpack.c.l.bf16 %v1754
        %v1770 = vunpack.c.h.bf16 %v1754
        %v1771 = vmul.f32 %v1757, %v1755
        %v1772 = vmul.f32 %v1758, %v1755
        %v1773 = vmul.f32 %v1759, %v1755
        %v1774 = vmul.f32 %v1760, %v1755
        %v1775 = vmul.f32 %v1761, %v1755
        %v1776 = vmul.f32 %v1762, %v1755
        %v1777 = vmul.f32 %v1763, %v1755
        %v1778 = vmul.f32 %v1764, %v1755
        %v1779 = vmul.f32 %v1765, %v1755
        %v1780 = vmul.f32 %v1766, %v1755
        %v1781 = vmul.f32 %v1767, %v1755
        %v1782 = vmul.f32 %v1768, %v1755
        %v1783 = vmul.f32 %v1769, %v1755
        %v1784 = vmul.f32 %v1770, %v1755
        %1785 = vadd.xlane.f32.xlu0 %v1771
        %v1786 = vpop.xlane.xlu0 %1785
        %1787 = vadd.xlane.f32.xlu0 %v1772
        %v1788 = vpop.xlane.xlu0 %1787
        %1789 = vadd.xlane.f32.xlu0 %v1773
        %v1790 = vpop.xlane.xlu0 %1789
        %1791 = vadd.xlane.f32.xlu0 %v1774
        %v1792 = vpop.xlane.xlu0 %1791
        %1793 = vadd.xlane.f32.xlu0 %v1775
        %v1794 = vpop.xlane.xlu0 %1793
        %1795 = vadd.xlane.f32.xlu0 %v1776
        %v1796 = vpop.xlane.xlu0 %1795
        %1797 = vadd.xlane.f32.xlu0 %v1777
        %v1798 = vpop.xlane.xlu0 %1797
        %1799 = vadd.xlane.f32.xlu0 %v1778
        %v1800 = vpop.xlane.xlu0 %1799
        %1801 = vadd.xlane.f32.xlu0 %v1779
        %v1802 = vpop.xlane.xlu0 %1801
        %1803 = vadd.xlane.f32.xlu0 %v1780
        %v1804 = vpop.xlane.xlu0 %1803
        %1805 = vadd.xlane.f32.xlu0 %v1781
        %v1806 = vpop.xlane.xlu0 %1805
        %1807 = vadd.xlane.f32.xlu0 %v1782
        %v1808 = vpop.xlane.xlu0 %1807
        %1809 = vadd.xlane.f32.xlu0 %v1783
        %v1810 = vpop.xlane.xlu0 %1809
        %1811 = vadd.xlane.f32.xlu0 %v1784
        %v1812 = vpop.xlane.xlu0 %1811
        %v1813 = vadd.f32 %v1786, %v1756
        %v1814 = vadd.f32 %v1788, %v1756
        %v1815 = vadd.f32 %v1790, %v1756
        %v1816 = vadd.f32 %v1792, %v1756
        %v1817 = vadd.f32 %v1794, %v1756
        %v1818 = vadd.f32 %v1796, %v1756
        %v1819 = vadd.f32 %v1798, %v1756
        %v1820 = vadd.f32 %v1800, %v1756
        %v1821 = vadd.f32 %v1802, %v1756
        %v1822 = vadd.f32 %v1804, %v1756
        %v1823 = vadd.f32 %v1806, %v1756
        %v1824 = vadd.f32 %v1808, %v1756
        %v1825 = vadd.f32 %v1810, %v1756
        %v1826 = vadd.f32 %v1812, %v1756
        %vm1827 = vcmask 7168
        %1828 = vst.msk [vmem:[%s187] sm:$0xff] %vm1827, %v1813
        %1829 = vst.msk [vmem:[%s187 + $0x8] sm:$0xff] %vm1827, %v1814
        %1830 = vst.msk [vmem:[%s187 + $0x10] sm:$0xff] %vm1827, %v1815
        %1831 = vst.msk [vmem:[%s187 + $0x18] sm:$0xff] %vm1827, %v1816
        %1832 = vst.msk [vmem:[%s187 + $0x20] sm:$0xff] %vm1827, %v1817
        %1833 = vst.msk [vmem:[%s187 + $0x28] sm:$0xff] %vm1827, %v1818
        %1834 = vst.msk [vmem:[%s187 + $0x30] sm:$0xff] %vm1827, %v1819
        %1835 = vst.msk [vmem:[%s187 + $0x38] sm:$0xff] %vm1827, %v1820
        %1836 = vst.msk [vmem:[%s187 + $0x40] sm:$0xff] %vm1827, %v1821
        %1837 = vst.msk [vmem:[%s187 + $0x48] sm:$0xff] %vm1827, %v1822
        %1838 = vst.msk [vmem:[%s187 + $0x50] sm:$0xff] %vm1827, %v1823
        %1839 = vst.msk [vmem:[%s187 + $0x58] sm:$0xff] %vm1827, %v1824
        %1840 = vst.msk [vmem:[%s187 + $0x60] sm:$0xff] %vm1827, %v1825
        %1841 = vst.msk [vmem:[%s187 + $0x68] sm:$0xff] %vm1827, %v1826
        %s1842 = smul.u32 14, %s15
        %p1843 = scmp.lt.s32.totalorder %s1842, 27
        %s1844 = scalar_select %p1843, %s1842, 27
        %s1845 = smul.addr %s1844, 8
        %s1846 = scalar_lea.vmem %s3, %s1845
        // Predicated region
        $region37: #{penn_forward.1} parent=31 // pred_check
          %p1847 = pneg %p101
        $region38: #{penn_forward.1} parent=31 // pred_check_branch
          %1849 = sbr.rel (%p1847) target = $region40
        $region39: #{penn_forward.1} parent=31 // pred_region
          %s1850 = smul.u32 14, %s15
        $region40: #{penn_forward.1} parent=31 // pred_fallthru
          _
      $region32: #{penn_forward.1} parent=5 // pred_fallthru
        _
      %p1851 = scmp.le.s32.totalorder 2, %s10
      // Predicated region
      $region41: #{penn_forward.1} parent=5 // pred_check
        %p1852 = pneg %p1851
      $region42: #{penn_forward.1} parent=5 // pred_check_branch
        %1854 = sbr.rel (%p1852) target = $region44
      $region43: #{penn_forward.1} parent=5 // pred_region
        %s1855 = ssub.s32 %s10, 2
        // Predicated region
        $region45: #{penn_forward.1} parent=43 // pred_check
          %p1856 = pneg %p107
        $region46: #{penn_forward.1} parent=43 // pred_check_branch
          %1858 = sbr.rel (%p1856) target = $region48
        $region47: #{penn_forward.1} parent=43 // pred_region
          %s1859 = smul.u32 14, %s16
          %p1860 = scmp.lt.s32.totalorder %s1859, 27
          %s1861 = scalar_select %p1860, %s1859, 27
          %s1862 = smul.addr %s1861, 8
          %s1863 = scalar_lea.vmem %s3, %s1862
        $region48: #{penn_forward.1} parent=43 // pred_fallthru
          _
      $region44: #{penn_forward.1} parent=5 // pred_fallthru
        _
    $region6: #{penn_forward.1} parent=1 // loop_footer
      %s14 = sadd.s32 1, %s10
    $region7: #{penn_forward.1} parent=1 // loop_footer_branch
      %9 = sbr.rel target = $region3
    $region8: #{penn_forward.1} parent=1 // loop_exit
      _
    %1864 = vsyncpa [#allocation3], 1
    %s1865 = scalar_lea.sflag [#allocation3], 1
    %1866 = vsyncpa %s1865, 1

</llo_original>
